<compile_context>
chip_gen: v6e
topology: v6e:2x2x1
jax: 0.10.0
libtpu: 0.0.40
codegen_flags: <defaults>
</compile_context>

<pallas_src>
import numpy as np
import jax
import jax.numpy as jnp
from jax.experimental import pallas as pl
from jax.experimental.pallas import tpu as pltpu

N_CONCEPTS = 16     # number of graph nodes (concepts)
N_SCENES = 12       # columns of the normalized init matrix
EMB_DIM = 32        # embedding_dim of the module
PROJ_HIDDEN = 16    # hidden width of Projection's MLP (Linear(1,16))
N_EDGES = 24        # edges per meta-path
N_PATHS = 3


def _vmem_spec():
    return pl.BlockSpec(memory_space=pltpu.MemorySpace.VMEM)


# ---------------------------------------------------------------------------
# Fused kernel: projection -> 3x (3-layer GCN) -> metapath softmax attention.
# All intermediates stay in VMEM / vregs; a single launch, no grid.
# ---------------------------------------------------------------------------
def hgc_fused_kernel(mask_ref, adj_ref, w1_ref, b1_ref, w2_ref, b2_ref,
                     wg_ref, watt_ref, batt_ref, out_ref):
    # ---- Projection: emb[i] = mean over nonzero cols j of MLP(float(j)) ----
    mask = mask_ref[...]                                        # [N, M]
    m_cols = mask.shape[1]
    # Column index generated in-kernel; Linear(1,16) on a scalar input is a
    # rank-1 broadcast (VPU), not an MXU matmul.
    idx = jax.lax.broadcasted_iota(jnp.int32, (m_cols, 1), 0).astype(jnp.float32)
    h1 = jnp.maximum(idx * w1_ref[...] + b1_ref[...], 0.0)      # [M, 16]
    P = jnp.dot(h1, w2_ref[...],
                preferred_element_type=jnp.float32) + b2_ref[...]       # [M, D]
    summed = jnp.dot(mask, P, preferred_element_type=jnp.float32)       # [N, D]
    cnt = jnp.sum(mask, axis=1, keepdims=True)                          # [N, 1]
    emb = summed / jnp.maximum(cnt, 1.0)                        # rows w/o nnz -> 0

    # ---- Three GCN meta-paths: h = relu((A @ h) @ W), 3 iterations each ----
    watt = watt_ref[...]                                        # [1, D]
    batt = batt_ref[...]                                        # [1, 1]
    outs = []
    scores = []
    for p in range(N_PATHS):                                    # unrolled
        A = adj_ref[p]                                          # [N, N]
        W = wg_ref[p]                                           # [D, D]
        h = emb
        for _ in range(3):                                      # unrolled
            h_agg = jnp.dot(A, h, preferred_element_type=jnp.float32)
            h = jnp.maximum(jnp.dot(h_agg, W,
                                    preferred_element_type=jnp.float32), 0.0)
        outs.append(h)
        # Attention score on VPU + lane reduce (no [N,D]@[D,1] matmul).
        scores.append(jnp.sum(h * watt, axis=-1, keepdims=True) + batt)  # [N, 1]

    # ---- MetaPathAttention: per-node softmax over the 3 path scores ----
    s0, s1, s2 = scores
    m = jnp.maximum(jnp.maximum(s0, s1), s2)
    x0 = jnp.exp(s0 - m)
    x1 = jnp.exp(s1 - m)
    x2 = jnp.exp(s2 - m)
    inv = 1.0 / (x0 + x1 + x2)                  # exact: softmax over only 3 terms
    out_ref[...] = (x0 * inv) * outs[0] + (x1 * inv) * outs[1] + (x2 * inv) * outs[2]


# ---------------------------------------------------------------------------
# Plain-JAX glue: batched adjacency build + the single fused pallas_call.
# ---------------------------------------------------------------------------
def build_adjacency_stack(edge_indices, edge_attrs, num_nodes):
    # scatter_add(h[row] * attr, col)  ==  A @ h  with  A[col, row] += attr
    # TODO(synk): the edge-list scatter itself stays in plain JAX (data-dependent
    # scatter); inside the kernel it is realised as the dense matmul A @ h.
    ei = jnp.stack(edge_indices)                                # [P, 2, E]
    ea = jnp.stack(edge_attrs)                                  # [P, E]
    n_paths, _, n_edges = ei.shape
    path_idx = jnp.broadcast_to(
        jnp.arange(n_paths, dtype=jnp.int32)[:, None], (n_paths, n_edges))
    A = jnp.zeros((n_paths, num_nodes, num_nodes), jnp.float32)
    return A.at[path_idx, ei[:, 1, :], ei[:, 0, :]].add(ea)     # one scatter op


@jax.jit
def hgc_cpt_forward(init_mat, edge_indices, edge_attrs, params):
    n = init_mat.shape[0]
    mask = (init_mat != 0).astype(jnp.float32)                  # [N, M]
    adj = build_adjacency_stack(edge_indices, edge_attrs, n)    # [3, N, N]
    wg = jnp.stack([params["Wcc"], params["Wcac"], params["Wcsc"]])  # [3, D, D]
    watt_row = params["w_att"].reshape(1, EMB_DIM)              # [1, D]
    return pl.pallas_call(
        hgc_fused_kernel,
        out_shape=jax.ShapeDtypeStruct((n, EMB_DIM), jnp.float32),
        in_specs=[_vmem_spec() for _ in range(9)],
        out_specs=_vmem_spec(),
    )(mask, adj, params["w1"], params["b1"], params["w2"], params["b2"],
      wg, watt_row, params["b_att"])


# ---------------------------------------------------------------------------
# Pure numpy reference matching the PyTorch semantics literally.
# ---------------------------------------------------------------------------
def ref_forward_np(init_mat, edge_indices, edge_attrs, params):
    init_np = np.asarray(init_mat)
    n, _ = init_np.shape
    w1, b1, w2, b2 = (np.asarray(params[k]) for k in ("w1", "b1", "w2", "b2"))
    embs = np.zeros((n, EMB_DIM), np.float32)
    for i in range(n):
        nz = np.nonzero(init_np[i])[0].astype(np.float32)
        if len(nz) == 0:
            continue
        x = nz.reshape(-1, 1)
        h1 = np.maximum(x @ w1 + b1, 0.0)
        p = h1 @ w2 + b2
        embs[i] = p.mean(axis=0)

    outs = []
    for ei, ea, Wk in zip(edge_indices, edge_attrs, ("Wcc", "Wcac", "Wcsc")):
        ei = np.asarray(ei)
        ea = np.asarray(ea)
        W = np.asarray(params[Wk])
        h = embs.copy()
        for _ in range(3):
            h_agg = np.zeros_like(h)
            for e in range(ei.shape[1]):
                h_agg[ei[1, e]] += h[ei[0, e]] * ea[e]
            h = np.maximum(h_agg @ W, 0.0)
        outs.append(h)

    watt = np.asarray(params["w_att"])
    batt = np.asarray(params["b_att"])
    scores = np.concatenate([o @ watt + batt for o in outs], axis=1)   # [N, 3]
    scores = scores - scores.max(axis=1, keepdims=True)
    ex = np.exp(scores)
    attn = ex / ex.sum(axis=1, keepdims=True)
    return sum(attn[:, i:i + 1] * outs[i] for i in range(3))


if __name__ == "__main__":
    key = jax.random.PRNGKey(0)
    keys = jax.random.split(key, 13)

    # sparse-ish normalized init matrix [num_concepts, num_scenes]
    vals = jax.random.uniform(keys[0], (N_CONCEPTS, N_SCENES), jnp.float32)
    keep = jax.random.uniform(keys[1], (N_CONCEPTS, N_SCENES)) > 0.5
    init_mat = jnp.where(keep, vals, 0.0).astype(jnp.float32)

    def xavier(k, shape):
        bound = float(np.sqrt(6.0 / (shape[0] + shape[1])))
        return jax.random.uniform(k, shape, jnp.float32, -bound, bound)

    params = dict(
        w1=xavier(keys[2], (1, PROJ_HIDDEN)),
        b1=0.01 * jax.random.normal(keys[3], (1, PROJ_HIDDEN), jnp.float32),
        w2=xavier(keys[4], (PROJ_HIDDEN, EMB_DIM)),
        b2=0.01 * jax.random.normal(keys[5], (1, EMB_DIM), jnp.float32),
        Wcc=xavier(keys[6], (EMB_DIM, EMB_DIM)),
        Wcac=xavier(keys[7], (EMB_DIM, EMB_DIM)),
        Wcsc=xavier(keys[8], (EMB_DIM, EMB_DIM)),
        w_att=xavier(keys[9], (EMB_DIM, 1)),
        b_att=jnp.full((1, 1), 0.05, jnp.float32),
    )

    def make_edges(k):
        k1, k2 = jax.random.split(k)
        ei = jax.random.randint(k1, (2, N_EDGES), 0, N_CONCEPTS, dtype=jnp.int32)
        ea = jax.random.uniform(k2, (N_EDGES,), jnp.float32, 0.1, 1.0)
        return ei, ea

    cc_ei, cc_ea = make_edges(keys[10])
    cac_ei, cac_ea = make_edges(keys[11])
    csc_ei, csc_ea = make_edges(keys[12])

    edge_indices = (cc_ei, cac_ei, csc_ei)
    edge_attrs = (cc_ea, cac_ea, csc_ea)

    out = hgc_cpt_forward(init_mat, edge_indices, edge_attrs, params)
    out = jax.block_until_ready(out)

    ref = ref_forward_np(init_mat, edge_indices, edge_attrs, params)
    # Exact (non-approx) softmax denominator -> tight f32 tolerance again.
    np.testing.assert_allclose(np.asarray(out), ref, rtol=1e-4, atol=1e-5)

    print("KERNEL_OK")
</pallas_src>

<mosaic_0001>
module attributes {stable_mosaic.version = 11 : i64} {
  func.func private @main(%arg0: i32) attributes {dimension_semantics = [#tpu.dimension_semantics<core_parallel>], iteration_bounds = array<i64: 2>, tpu.core_type = #tpu.core_type<sc_scalar_subcore>, window_params = []} {
    return
  }
}

module attributes {stable_mosaic.version = 11 : i64} {
  func.func private @main(%arg0: i32) attributes {dimension_semantics = [#tpu.dimension_semantics<core_parallel>], iteration_bounds = array<i64: 2>, tpu.core_type = #tpu.core_type<sc_scalar_subcore>, window_params = []} {
    return
  }
}

module attributes {stable_mosaic.version = 11 : i64} {
  func.func @hgc_fused_kernel(%arg0: memref<16x12xf32, #tpu.memory_space<vmem>>, %arg1: memref<3x16x16xf32, #tpu.memory_space<vmem>>, %arg2: memref<1x16xf32, #tpu.memory_space<vmem>>, %arg3: memref<1x16xf32, #tpu.memory_space<vmem>>, %arg4: memref<16x32xf32, #tpu.memory_space<vmem>>, %arg5: memref<1x32xf32, #tpu.memory_space<vmem>>, %arg6: memref<3x32x32xf32, #tpu.memory_space<vmem>>, %arg7: memref<1x32xf32, #tpu.memory_space<vmem>>, %arg8: memref<1x1xf32, #tpu.memory_space<vmem>>, %arg9: memref<16x32xf32, #tpu.memory_space<vmem>>) attributes {dimension_semantics = [], scalar_prefetch = 0 : i64, scratch_operands = 0 : i64, tpu.core_type = #tpu.core_type<tc>} {
    %c0 = arith.constant 0 : index
    %c0_0 = arith.constant 0 : index
    %0 = vector.load %arg0[%c0, %c0_0] : memref<16x12xf32, #tpu.memory_space<vmem>>, vector<16x12xf32>
    %1 = tpu.iota {dimensions = array<i32: 0>} : vector<12x1xi32>
    %2 = arith.sitofp %1 : vector<12x1xi32> to vector<12x1xf32>
    %c0_1 = arith.constant 0 : index
    %c0_2 = arith.constant 0 : index
    %3 = vector.load %arg2[%c0_1, %c0_2] : memref<1x16xf32, #tpu.memory_space<vmem>>, vector<1x16xf32>
    %4 = vector.broadcast %2 : vector<12x1xf32> to vector<12x16xf32>
    %5 = vector.broadcast %3 : vector<1x16xf32> to vector<12x16xf32>
    %6 = arith.mulf %4, %5 : vector<12x16xf32>
    %c0_3 = arith.constant 0 : index
    %c0_4 = arith.constant 0 : index
    %7 = vector.load %arg3[%c0_3, %c0_4] : memref<1x16xf32, #tpu.memory_space<vmem>>, vector<1x16xf32>
    %8 = vector.broadcast %7 : vector<1x16xf32> to vector<12x16xf32>
    %9 = arith.addf %6, %8 : vector<12x16xf32>
    %cst = arith.constant 0.000000e+00 : f32
    %10 = vector.broadcast %cst : f32 to vector<12x16xf32>
    %11 = arith.maximumf %9, %10 : vector<12x16xf32>
    %c0_5 = arith.constant 0 : index
    %c0_6 = arith.constant 0 : index
    %12 = vector.load %arg4[%c0_5, %c0_6] : memref<16x32xf32, #tpu.memory_space<vmem>>, vector<16x32xf32>
    %cst_7 = arith.constant dense<0.000000e+00> : vector<12x32xf32>
    %13 = tpu.matmul %11, %12, %cst_7 {dimension_numbers = #tpu.dot_dimension_numbers<[1], [0], [0], [1], [0, 0, 1, 1], [], []>} : vector<12x16xf32>, vector<16x32xf32>, vector<12x32xf32> -> vector<12x32xf32>
    %c0_8 = arith.constant 0 : index
    %c0_9 = arith.constant 0 : index
    %14 = vector.load %arg5[%c0_8, %c0_9] : memref<1x32xf32, #tpu.memory_space<vmem>>, vector<1x32xf32>
    %15 = vector.broadcast %14 : vector<1x32xf32> to vector<12x32xf32>
    %16 = arith.addf %13, %15 : vector<12x32xf32>
    %cst_10 = arith.constant dense<0.000000e+00> : vector<16x32xf32>
    %17 = tpu.matmul %0, %16, %cst_10 {dimension_numbers = #tpu.dot_dimension_numbers<[1], [0], [0], [1], [0, 0, 1, 1], [], []>} : vector<16x12xf32>, vector<12x32xf32>, vector<16x32xf32> -> vector<16x32xf32>
    %cst_11 = arith.constant dense<0.000000e+00> : vector<16xf32>
    %18 = vector.multi_reduction <add>, %0, %cst_11 [1] : vector<16x12xf32> to vector<16xf32>
    %19 = vector.shape_cast %18 : vector<16xf32> to vector<16x1xf32>
    %cst_12 = arith.constant 1.000000e+00 : f32
    %20 = vector.broadcast %cst_12 : f32 to vector<16x1xf32>
    %21 = arith.maximumf %19, %20 : vector<16x1xf32>
    %22 = vector.broadcast %21 : vector<16x1xf32> to vector<16x32xf32>
    %23 = arith.divf %17, %22 : vector<16x32xf32>
    %c0_13 = arith.constant 0 : index
    %c0_14 = arith.constant 0 : index
    %24 = vector.load %arg7[%c0_13, %c0_14] : memref<1x32xf32, #tpu.memory_space<vmem>>, vector<1x32xf32>
    %c0_15 = arith.constant 0 : index
    %c0_16 = arith.constant 0 : index
    %25 = vector.load %arg8[%c0_15, %c0_16] : memref<1x1xf32, #tpu.memory_space<vmem>>, vector<1x1xf32>
    %c0_17 = arith.constant 0 : index
    %c0_18 = arith.constant 0 : index
    %c0_19 = arith.constant 0 : index
    %26 = vector.load %arg1[%c0_17, %c0_18, %c0_19] : memref<3x16x16xf32, #tpu.memory_space<vmem>>, vector<1x16x16xf32>
    %27 = vector.shape_cast %26 : vector<1x16x16xf32> to vector<16x16xf32>
    %c0_20 = arith.constant 0 : index
    %c0_21 = arith.constant 0 : index
    %c0_22 = arith.constant 0 : index
    %28 = vector.load %arg6[%c0_20, %c0_21, %c0_22] : memref<3x32x32xf32, #tpu.memory_space<vmem>>, vector<1x32x32xf32>
    %29 = vector.shape_cast %28 : vector<1x32x32xf32> to vector<32x32xf32>
    %cst_23 = arith.constant dense<0.000000e+00> : vector<16x32xf32>
    %30 = tpu.matmul %27, %23, %cst_23 {dimension_numbers = #tpu.dot_dimension_numbers<[1], [0], [0], [1], [0, 0, 1, 1], [], []>} : vector<16x16xf32>, vector<16x32xf32>, vector<16x32xf32> -> vector<16x32xf32>
    %cst_24 = arith.constant dense<0.000000e+00> : vector<16x32xf32>
    %31 = tpu.matmul %30, %29, %cst_24 {dimension_numbers = #tpu.dot_dimension_numbers<[1], [0], [0], [1], [0, 0, 1, 1], [], []>} : vector<16x32xf32>, vector<32x32xf32>, vector<16x32xf32> -> vector<16x32xf32>
    %cst_25 = arith.constant 0.000000e+00 : f32
    %32 = vector.broadcast %cst_25 : f32 to vector<16x32xf32>
    %33 = arith.maximumf %31, %32 : vector<16x32xf32>
    %cst_26 = arith.constant dense<0.000000e+00> : vector<16x32xf32>
    %34 = tpu.matmul %27, %33, %cst_26 {dimension_numbers = #tpu.dot_dimension_numbers<[1], [0], [0], [1], [0, 0, 1, 1], [], []>} : vector<16x16xf32>, vector<16x32xf32>, vector<16x32xf32> -> vector<16x32xf32>
    %cst_27 = arith.constant dense<0.000000e+00> : vector<16x32xf32>
    %35 = tpu.matmul %34, %29, %cst_27 {dimension_numbers = #tpu.dot_dimension_numbers<[1], [0], [0], [1], [0, 0, 1, 1], [], []>} : vector<16x32xf32>, vector<32x32xf32>, vector<16x32xf32> -> vector<16x32xf32>
    %cst_28 = arith.constant 0.000000e+00 : f32
    %36 = vector.broadcast %cst_28 : f32 to vector<16x32xf32>
    %37 = arith.maximumf %35, %36 : vector<16x32xf32>
    %cst_29 = arith.constant dense<0.000000e+00> : vector<16x32xf32>
    %38 = tpu.matmul %27, %37, %cst_29 {dimension_numbers = #tpu.dot_dimension_numbers<[1], [0], [0], [1], [0, 0, 1, 1], [], []>} : vector<16x16xf32>, vector<16x32xf32>, vector<16x32xf32> -> vector<16x32xf32>
    %cst_30 = arith.constant dense<0.000000e+00> : vector<16x32xf32>
    %39 = tpu.matmul %38, %29, %cst_30 {dimension_numbers = #tpu.dot_dimension_numbers<[1], [0], [0], [1], [0, 0, 1, 1], [], []>} : vector<16x32xf32>, vector<32x32xf32>, vector<16x32xf32> -> vector<16x32xf32>
    %cst_31 = arith.constant 0.000000e+00 : f32
    %40 = vector.broadcast %cst_31 : f32 to vector<16x32xf32>
    %41 = arith.maximumf %39, %40 : vector<16x32xf32>
    %42 = vector.broadcast %24 : vector<1x32xf32> to vector<16x32xf32>
    %43 = arith.mulf %41, %42 : vector<16x32xf32>
    %cst_32 = arith.constant dense<0.000000e+00> : vector<16xf32>
    %44 = vector.multi_reduction <add>, %43, %cst_32 [1] : vector<16x32xf32> to vector<16xf32>
    %45 = vector.shape_cast %44 : vector<16xf32> to vector<16x1xf32>
    %46 = vector.broadcast %25 : vector<1x1xf32> to vector<16x1xf32>
    %47 = arith.addf %45, %46 : vector<16x1xf32>
    %c1 = arith.constant 1 : index
    %c0_33 = arith.constant 0 : index
    %c0_34 = arith.constant 0 : index
    %48 = vector.load %arg1[%c1, %c0_33, %c0_34] : memref<3x16x16xf32, #tpu.memory_space<vmem>>, vector<1x16x16xf32>
    %49 = vector.shape_cast %48 : vector<1x16x16xf32> to vector<16x16xf32>
    %c1_35 = arith.constant 1 : index
    %c0_36 = arith.constant 0 : index
    %c0_37 = arith.constant 0 : index
    %50 = vector.load %arg6[%c1_35, %c0_36, %c0_37] : memref<3x32x32xf32, #tpu.memory_space<vmem>>, vector<1x32x32xf32>
    %51 = vector.shape_cast %50 : vector<1x32x32xf32> to vector<32x32xf32>
    %cst_38 = arith.constant dense<0.000000e+00> : vector<16x32xf32>
    %52 = tpu.matmul %49, %23, %cst_38 {dimension_numbers = #tpu.dot_dimension_numbers<[1], [0], [0], [1], [0, 0, 1, 1], [], []>} : vector<16x16xf32>, vector<16x32xf32>, vector<16x32xf32> -> vector<16x32xf32>
    %cst_39 = arith.constant dense<0.000000e+00> : vector<16x32xf32>
    %53 = tpu.matmul %52, %51, %cst_39 {dimension_numbers = #tpu.dot_dimension_numbers<[1], [0], [0], [1], [0, 0, 1, 1], [], []>} : vector<16x32xf32>, vector<32x32xf32>, vector<16x32xf32> -> vector<16x32xf32>
    %cst_40 = arith.constant 0.000000e+00 : f32
    %54 = vector.broadcast %cst_40 : f32 to vector<16x32xf32>
    %55 = arith.maximumf %53, %54 : vector<16x32xf32>
    %cst_41 = arith.constant dense<0.000000e+00> : vector<16x32xf32>
    %56 = tpu.matmul %49, %55, %cst_41 {dimension_numbers = #tpu.dot_dimension_numbers<[1], [0], [0], [1], [0, 0, 1, 1], [], []>} : vector<16x16xf32>, vector<16x32xf32>, vector<16x32xf32> -> vector<16x32xf32>
    %cst_42 = arith.constant dense<0.000000e+00> : vector<16x32xf32>
    %57 = tpu.matmul %56, %51, %cst_42 {dimension_numbers = #tpu.dot_dimension_numbers<[1], [0], [0], [1], [0, 0, 1, 1], [], []>} : vector<16x32xf32>, vector<32x32xf32>, vector<16x32xf32> -> vector<16x32xf32>
    %cst_43 = arith.constant 0.000000e+00 : f32
    %58 = vector.broadcast %cst_43 : f32 to vector<16x32xf32>
    %59 = arith.maximumf %57, %58 : vector<16x32xf32>
    %cst_44 = arith.constant dense<0.000000e+00> : vector<16x32xf32>
    %60 = tpu.matmul %49, %59, %cst_44 {dimension_numbers = #tpu.dot_dimension_numbers<[1], [0], [0], [1], [0, 0, 1, 1], [], []>} : vector<16x16xf32>, vector<16x32xf32>, vector<16x32xf32> -> vector<16x32xf32>
    %cst_45 = arith.constant dense<0.000000e+00> : vector<16x32xf32>
    %61 = tpu.matmul %60, %51, %cst_45 {dimension_numbers = #tpu.dot_dimension_numbers<[1], [0], [0], [1], [0, 0, 1, 1], [], []>} : vector<16x32xf32>, vector<32x32xf32>, vector<16x32xf32> -> vector<16x32xf32>
    %cst_46 = arith.constant 0.000000e+00 : f32
    %62 = vector.broadcast %cst_46 : f32 to vector<16x32xf32>
    %63 = arith.maximumf %61, %62 : vector<16x32xf32>
    %64 = vector.broadcast %24 : vector<1x32xf32> to vector<16x32xf32>
    %65 = arith.mulf %63, %64 : vector<16x32xf32>
    %cst_47 = arith.constant dense<0.000000e+00> : vector<16xf32>
    %66 = vector.multi_reduction <add>, %65, %cst_47 [1] : vector<16x32xf32> to vector<16xf32>
    %67 = vector.shape_cast %66 : vector<16xf32> to vector<16x1xf32>
    %68 = vector.broadcast %25 : vector<1x1xf32> to vector<16x1xf32>
    %69 = arith.addf %67, %68 : vector<16x1xf32>
    %c2 = arith.constant 2 : index
    %c0_48 = arith.constant 0 : index
    %c0_49 = arith.constant 0 : index
    %70 = vector.load %arg1[%c2, %c0_48, %c0_49] : memref<3x16x16xf32, #tpu.memory_space<vmem>>, vector<1x16x16xf32>
    %71 = vector.shape_cast %70 : vector<1x16x16xf32> to vector<16x16xf32>
    %c2_50 = arith.constant 2 : index
    %c0_51 = arith.constant 0 : index
    %c0_52 = arith.constant 0 : index
    %72 = vector.load %arg6[%c2_50, %c0_51, %c0_52] : memref<3x32x32xf32, #tpu.memory_space<vmem>>, vector<1x32x32xf32>
    %73 = vector.shape_cast %72 : vector<1x32x32xf32> to vector<32x32xf32>
    %cst_53 = arith.constant dense<0.000000e+00> : vector<16x32xf32>
    %74 = tpu.matmul %71, %23, %cst_53 {dimension_numbers = #tpu.dot_dimension_numbers<[1], [0], [0], [1], [0, 0, 1, 1], [], []>} : vector<16x16xf32>, vector<16x32xf32>, vector<16x32xf32> -> vector<16x32xf32>
    %cst_54 = arith.constant dense<0.000000e+00> : vector<16x32xf32>
    %75 = tpu.matmul %74, %73, %cst_54 {dimension_numbers = #tpu.dot_dimension_numbers<[1], [0], [0], [1], [0, 0, 1, 1], [], []>} : vector<16x32xf32>, vector<32x32xf32>, vector<16x32xf32> -> vector<16x32xf32>
    %cst_55 = arith.constant 0.000000e+00 : f32
    %76 = vector.broadcast %cst_55 : f32 to vector<16x32xf32>
    %77 = arith.maximumf %75, %76 : vector<16x32xf32>
    %cst_56 = arith.constant dense<0.000000e+00> : vector<16x32xf32>
    %78 = tpu.matmul %71, %77, %cst_56 {dimension_numbers = #tpu.dot_dimension_numbers<[1], [0], [0], [1], [0, 0, 1, 1], [], []>} : vector<16x16xf32>, vector<16x32xf32>, vector<16x32xf32> -> vector<16x32xf32>
    %cst_57 = arith.constant dense<0.000000e+00> : vector<16x32xf32>
    %79 = tpu.matmul %78, %73, %cst_57 {dimension_numbers = #tpu.dot_dimension_numbers<[1], [0], [0], [1], [0, 0, 1, 1], [], []>} : vector<16x32xf32>, vector<32x32xf32>, vector<16x32xf32> -> vector<16x32xf32>
    %cst_58 = arith.constant 0.000000e+00 : f32
    %80 = vector.broadcast %cst_58 : f32 to vector<16x32xf32>
    %81 = arith.maximumf %79, %80 : vector<16x32xf32>
    %cst_59 = arith.constant dense<0.000000e+00> : vector<16x32xf32>
    %82 = tpu.matmul %71, %81, %cst_59 {dimension_numbers = #tpu.dot_dimension_numbers<[1], [0], [0], [1], [0, 0, 1, 1], [], []>} : vector<16x16xf32>, vector<16x32xf32>, vector<16x32xf32> -> vector<16x32xf32>
    %cst_60 = arith.constant dense<0.000000e+00> : vector<16x32xf32>
    %83 = tpu.matmul %82, %73, %cst_60 {dimension_numbers = #tpu.dot_dimension_numbers<[1], [0], [0], [1], [0, 0, 1, 1], [], []>} : vector<16x32xf32>, vector<32x32xf32>, vector<16x32xf32> -> vector<16x32xf32>
    %cst_61 = arith.constant 0.000000e+00 : f32
    %84 = vector.broadcast %cst_61 : f32 to vector<16x32xf32>
    %85 = arith.maximumf %83, %84 : vector<16x32xf32>
    %86 = vector.broadcast %24 : vector<1x32xf32> to vector<16x32xf32>
    %87 = arith.mulf %85, %86 : vector<16x32xf32>
    %cst_62 = arith.constant dense<0.000000e+00> : vector<16xf32>
    %88 = vector.multi_reduction <add>, %87, %cst_62 [1] : vector<16x32xf32> to vector<16xf32>
    %89 = vector.shape_cast %88 : vector<16xf32> to vector<16x1xf32>
    %90 = vector.broadcast %25 : vector<1x1xf32> to vector<16x1xf32>
    %91 = arith.addf %89, %90 : vector<16x1xf32>
    %92 = arith.maximumf %47, %69 : vector<16x1xf32>
    %93 = arith.maximumf %92, %91 : vector<16x1xf32>
    %94 = arith.subf %47, %93 : vector<16x1xf32>
    %95 = math.exp %94 : vector<16x1xf32>
    %96 = arith.subf %69, %93 : vector<16x1xf32>
    %97 = math.exp %96 : vector<16x1xf32>
    %98 = arith.subf %91, %93 : vector<16x1xf32>
    %99 = math.exp %98 : vector<16x1xf32>
    %100 = arith.addf %95, %97 : vector<16x1xf32>
    %101 = arith.addf %100, %99 : vector<16x1xf32>
    %cst_63 = arith.constant 1.000000e+00 : f32
    %102 = vector.broadcast %cst_63 : f32 to vector<16x1xf32>
    %103 = arith.divf %102, %101 : vector<16x1xf32>
    %104 = arith.mulf %95, %103 : vector<16x1xf32>
    %105 = vector.broadcast %104 : vector<16x1xf32> to vector<16x32xf32>
    %106 = arith.mulf %105, %41 : vector<16x32xf32>
    %107 = arith.mulf %97, %103 : vector<16x1xf32>
    %108 = vector.broadcast %107 : vector<16x1xf32> to vector<16x32xf32>
    %109 = arith.mulf %108, %63 : vector<16x32xf32>
    %110 = arith.addf %106, %109 : vector<16x32xf32>
    %111 = arith.mulf %99, %103 : vector<16x1xf32>
    %112 = vector.broadcast %111 : vector<16x1xf32> to vector<16x32xf32>
    %113 = arith.mulf %112, %85 : vector<16x32xf32>
    %114 = arith.addf %110, %113 : vector<16x32xf32>
    %c0_64 = arith.constant 0 : index
    %c0_65 = arith.constant 0 : index
    %115 = vector.load %arg9[%c0_64, %c0_65] : memref<16x32xf32, #tpu.memory_space<vmem>>, vector<16x32xf32>
    tpu.vector_store %arg9[%c0_64, %c0_65], %114 {strides = array<i32>} : memref<16x32xf32, #tpu.memory_space<vmem>>, vector<16x32xf32>,
    return
  }
}

</mosaic_0001>

<llo_original>
// kernel: hgc_cpt_forward.1
$region0: #{hgc_cpt_forward.1}
  #allocation0 [shape = 'u32[]', space=smem, size = 0x4, offset = 0x4, fixed_abs, tag = 'smem constant byte address 0x4 - core index']
  #allocation1 [shape = 'u32[144,128]{1,0:T(1,128)}', space=vmem, size = 0x12000, scoped, tag = 'internal scratch']
  #allocation2 [shape = 'f32[1,1]{1,0:T(1,128)S(1)}', space=vmem, size = 0x200, scoped, tag = 'scoped memory for hgc_cpt_forward.1']
  %s0 = inlined_call_operand.vmem [shape: f32[16,12], index: 0, kind: input, shape index: {}]
  %s1 = inlined_call_operand.hbm [shape: f32[3,16,16], index: 1, kind: input, shape index: {}]
  %s2 = inlined_call_operand.vmem [shape: f32[1,16], index: 2, kind: input, shape index: {}]
  %s3 = inlined_call_operand.vmem [shape: f32[1,16], index: 3, kind: input, shape index: {}]
  %s4 = inlined_call_operand.vmem [shape: f32[16,32], index: 4, kind: input, shape index: {}]
  %s5 = inlined_call_operand.vmem [shape: f32[1,32], index: 5, kind: input, shape index: {}]
  %s6 = inlined_call_operand.vmem [shape: f32[3,32,32], index: 6, kind: input, shape index: {}]
  %s7 = inlined_call_operand.vmem [shape: f32[1,32], index: 7, kind: input, shape index: {}]
  %s8 = inlined_call_operand.<no memory space> [shape: f32[1,1], index: 8, kind: input, shape index: {}]
  %s9 = inlined_call_operand.hbm [shape: f32[16,32], index: 9, kind: output, shape index: {}]
  %s10 = sld [smem:[#allocation0]]
  $region50: #{hgc_cpt_forward.1} parent=0
    _
  %s12 = ssub.s32 1, %s10
  %s13 = scalar_select 0, %s12, %s10
  %v14 = vstv %s8
  %15 = vst [vmem:[#allocation2] sm:$0x1] %v14
  $region1: #{hgc_cpt_forward.1} parent=0
    #allocation3 [shape = 'u8[24576]{0}', space=vmem, size = 0x6000, scoped, tag = 'input window, operand 1, single buffered']
    #allocation4 [shape = 's32[1]{0}', space=sflag, size = 0x4, scoped, tag = 'scoped memory for hgc_cpt_forward.1']
    #allocation5 [shape = 's32[1]{0}', space=sflag, size = 0x4, scoped, tag = 'scoped memory for hgc_cpt_forward.1']
    #allocation6 [shape = 'u8[8192]{0}', space=vmem, size = 0x2000, scoped, tag = 'output window, operand 0, single buffered']
    %16 = vsyncpa [#allocation4], 0
    %17 = vsyncpa [#allocation5], 0
    // Predicated region
    $region2: #{hgc_cpt_forward.1} parent=1 // pred_check
      _
    $region3: #{hgc_cpt_forward.1} parent=1 // pred_check_branch
      %19 = sbr.rel (0) target = $region5
    $region4: #{hgc_cpt_forward.1} parent=1 // pred_region
      _
    $region5: #{hgc_cpt_forward.1} parent=1 // pred_fallthru
      _
    // Predicated region
    $region6: #{hgc_cpt_forward.1} parent=1 // pred_check
      _
    $region7: #{hgc_cpt_forward.1} parent=1 // pred_check_branch
      %21 = sbr.rel (0) target = $region9
    $region8: #{hgc_cpt_forward.1} parent=1 // pred_region
      %s23 = ssub.s32 768, 768
      %24 = vsyncadd [#allocation4], %s23
      %s25 = sshll.u32 [#allocation3], 4
      %s26 = int_to_ptr.vmem [resolvable:$true] %s25
      %31 = dma.hbm_to_vmem [thread:$0]  %s1, 768, %s26, [#allocation4], 128, 128, 8
    $region9: #{hgc_cpt_forward.1} parent=1 // pred_fallthru
      _
    // Predicated region
    $region10: #{hgc_cpt_forward.1} parent=1 // pred_check
      _
    $region11: #{hgc_cpt_forward.1} parent=1 // pred_check_branch
      %33 = sbr.rel (0) target = $region13
    $region12: #{hgc_cpt_forward.1} parent=1 // pred_region
      _
    $region13: #{hgc_cpt_forward.1} parent=1 // pred_fallthru
      _
    // Predicated region
    $region14: #{hgc_cpt_forward.1} parent=1 // pred_check
      _
    $region15: #{hgc_cpt_forward.1} parent=1 // pred_check_branch
      %35 = sbr.rel (0) target = $region17
    $region16: #{hgc_cpt_forward.1} parent=1 // pred_region
      _
    $region17: #{hgc_cpt_forward.1} parent=1 // pred_fallthru
      _
    // Predicated region
    $region18: #{hgc_cpt_forward.1} parent=1 // pred_check
      _
    $region19: #{hgc_cpt_forward.1} parent=1 // pred_check_branch
      %37 = sbr.rel (0) target = $region21
    $region20: #{hgc_cpt_forward.1} parent=1 // pred_region
      _
    $region21: #{hgc_cpt_forward.1} parent=1 // pred_fallthru
      _
    // Predicated region
    $region22: #{hgc_cpt_forward.1} parent=1 // pred_check
      _
    $region23: #{hgc_cpt_forward.1} parent=1 // pred_check_branch
      %39 = sbr.rel (0) target = $region25
    $region24: #{hgc_cpt_forward.1} parent=1 // pred_region
      _
    $region25: #{hgc_cpt_forward.1} parent=1 // pred_fallthru
      _
    // Predicated region
    $region26: #{hgc_cpt_forward.1} parent=1 // pred_check
      _
    $region27: #{hgc_cpt_forward.1} parent=1 // pred_check_branch
      %41 = sbr.rel (0) target = $region29
    $region28: #{hgc_cpt_forward.1} parent=1 // pred_region
      _
    $region29: #{hgc_cpt_forward.1} parent=1 // pred_fallthru
      _
    // Predicated region
    $region30: #{hgc_cpt_forward.1} parent=1 // pred_check
      _
    $region31: #{hgc_cpt_forward.1} parent=1 // pred_check_branch
      %43 = sbr.rel (0) target = $region33
    $region32: #{hgc_cpt_forward.1} parent=1 // pred_region
      _
    $region33: #{hgc_cpt_forward.1} parent=1 // pred_fallthru
      _
    // Predicated region
    $region34: #{hgc_cpt_forward.1} parent=1 // pred_check
      _
    $region35: #{hgc_cpt_forward.1} parent=1 // pred_check_branch
      %45 = sbr.rel (0) target = $region37
    $region36: #{hgc_cpt_forward.1} parent=1 // pred_region
      _
    $region37: #{hgc_cpt_forward.1} parent=1 // pred_fallthru
      _
    // Predicated region
    $region38: #{hgc_cpt_forward.1} parent=1 // pred_check
      _
    $region39: #{hgc_cpt_forward.1} parent=1 // pred_check_branch
      %47 = sbr.rel (0) target = $region41
    $region40: #{hgc_cpt_forward.1} parent=1 // pred_region
      %48 = dma.done [#allocation4], 768
    $region41: #{hgc_cpt_forward.1} parent=1 // pred_fallthru
      _
    %v49 = vld [vmem:[%s0] sm:$0xff]
    %v50 = vld [vmem:[%s0 + $0x8] sm:$0xff]
    %v51 = vlaneseq
    %v52 = vshrl.u32 %v51, 7
    %v53 = vadd.s32 %v52, 8
    %v54 = vcvt.s32.f32 %v52
    %v55 = vcvt.s32.f32 %v53
    %v56 = vld [vmem:[%s2] sm:$0x1]
    %v58 = vlaneseq
    %v59 = vshrl.u32 %v58, 7
    %v60 = vsub.s32 0, %v59
    %v61 = vrot.slane %v56, %v60
    %v63 = vmul.f32 %v54, %v61
    %v64 = vmul.f32 %v55, %v61
    %v65 = vld [vmem:[%s3] sm:$0x1]
    %v67 = vlaneseq
    %v68 = vshrl.u32 %v67, 7
    %v69 = vsub.s32 0, %v68
    %v70 = vrot.slane %v65, %v69
    %v72 = vadd.f32 %v63, %v70
    %v73 = vadd.f32 %v64, %v70
    %v74 = vmax.f32 %v72, 0.0
    %v75 = vmax.f32 %v73, 0.0
    %v76 = vld [vmem:[%s4] sm:$0xff]
    %v77 = vld [vmem:[%s4 + $0x8] sm:$0xff]
    %v78 = vld [vmem:[%s5] sm:$0x1]
    %v80 = vlaneseq
    %v81 = vshrl.u32 %v80, 7
    %v82 = vsub.s32 0, %v81
    %v83 = vrot.slane %v78, %v82
    %vm85 = vcmask 130048
    %v87 = vsel %vm85, %v74, 0
    %v90 = vsel %vm85, %v75, 0
    %92 = vmatprep.subr.mxu0 0.0
    %93 = vmatpush1.msra.mxu0 0.0
    %94 = vmatprep.subr.mxu0 0.0
    %95 = vmatpush1.msra.mxu0 0.0
    %96 = vmatprep.subr.mxu0 0.0
    %97 = vmatpush1.msra.mxu0 0.0
    %98 = vmatprep.subr.mxu0 0.0
    %99 = vmatpush1.msra.mxu0 0.0
    %100 = vmatprep.subr.mxu0 0.0
    %101 = vmatpush1.msra.mxu0 0.0
    %102 = vmatprep.subr.mxu0 0.0
    %103 = vmatpush1.msra.mxu0 0.0
    %104 = vmatprep.subr.mxu0 0.0
    %105 = vmatpush1.msra.mxu0 0.0
    %106 = vmatprep.subr.mxu0 0.0
    %107 = vmatpush1.msra.mxu0 0.0
    %108 = vmatprep.subr.mxu0 0.0
    %109 = vmatpush1.msra.mxu0 0.0
    %110 = vmatprep.subr.mxu0 0.0
    %111 = vmatpush1.msra.mxu0 0.0
    %112 = vmatprep.subr.mxu0 0.0
    %113 = vmatpush1.msra.mxu0 0.0
    %114 = vmatprep.subr.mxu0 0.0
    %115 = vmatpush1.msra.mxu0 0.0
    %116 = vmatprep.subr.mxu0 0.0
    %117 = vmatpush1.msra.mxu0 0.0
    %118 = vmatprep.subr.mxu0 0.0
    %119 = vmatpush1.msra.mxu0 0.0
    %120 = vmatprep.subr.mxu0 0.0
    %121 = vmatpush1.msra.mxu0 %v77
    %122 = vmatprep.subr.mxu0 0.0
    %123 = vmatpush1.msra.mxu0 %v76
    %124 = vmatprep.subr.mxu0 0.0
    %125 = vmatpush2.msra.mxu0 0.0
    %126 = vmatprep.subr.mxu0 0.0
    %127 = vmatpush2.msra.mxu0 0.0
    %128 = vmatprep.subr.mxu0 0.0
    %129 = vmatpush2.msra.mxu0 0.0
    %130 = vmatprep.subr.mxu0 0.0
    %131 = vmatpush2.msra.mxu0 0.0
    %132 = vmatprep.subr.mxu0 0.0
    %133 = vmatpush2.msra.mxu0 0.0
    %134 = vmatprep.subr.mxu0 0.0
    %135 = vmatpush2.msra.mxu0 0.0
    %136 = vmatprep.subr.mxu0 0.0
    %137 = vmatpush2.msra.mxu0 0.0
    %138 = vmatprep.subr.mxu0 0.0
    %139 = vmatpush2.msra.mxu0 0.0
    %140 = vmatprep.subr.mxu0 0.0
    %141 = vmatpush2.msra.mxu0 0.0
    %142 = vmatprep.subr.mxu0 0.0
    %143 = vmatpush2.msra.mxu0 0.0
    %144 = vmatprep.subr.mxu0 0.0
    %145 = vmatpush2.msra.mxu0 0.0
    %146 = vmatprep.subr.mxu0 0.0
    %147 = vmatpush2.msra.mxu0 0.0
    %148 = vmatprep.subr.mxu0 0.0
    %149 = vmatpush2.msra.mxu0 0.0
    %150 = vmatprep.subr.mxu0 0.0
    %151 = vmatpush2.msra.mxu0 0.0
    %152 = vmatprep.subr.mxu0 0.0
    %153 = vmatpush2.msra.mxu0 0.0
    %154 = vmatprep.subr.mxu0 0.0
    %155 = vmatpush2.msra.mxu0 0.0
    %156 = vmatprep.mubr.f32.mxu0 0.0
    %157 = vmatmul.mubr.f32.gmra.mxu0 %v87
    %v158 = vpop.f32.mrf.mxu0
    %v159 = vadd.f32 %v83, %v158
    %v160 = vpop.f32.mrf.mxu0
    %161 = vmatprep.mubr.f32.mxu0 0.0
    %162 = vmatmul.mubr.f32.gmra.mxu0 %v90
    %v163 = vpop.f32.mrf.mxu0
    %v164 = vadd.f32 %v83, %v163
    %v165 = vpop.f32.mrf.mxu0
    %166 = vdwg.mxu0
    %vm167 = vcmask 97280
    %v169 = vsel %vm167, %v49, 0
    %v172 = vsel %vm167, %v50, 0
    %vm174 = vcmask 1043456
    %v176 = vsel %vm174, %v164, 0
    %178 = vmatprep.subr.mxu0 0.0
    %179 = vmatpush1.msra.mxu0 0.0
    %180 = vmatprep.subr.mxu0 0.0
    %181 = vmatpush1.msra.mxu0 0.0
    %182 = vmatprep.subr.mxu0 0.0
    %183 = vmatpush1.msra.mxu0 0.0
    %184 = vmatprep.subr.mxu0 0.0
    %185 = vmatpush1.msra.mxu0 0.0
    %186 = vmatprep.subr.mxu0 0.0
    %187 = vmatpush1.msra.mxu0 0.0
    %188 = vmatprep.subr.mxu0 0.0
    %189 = vmatpush1.msra.mxu0 0.0
    %190 = vmatprep.subr.mxu0 0.0
    %191 = vmatpush1.msra.mxu0 0.0
    %192 = vmatprep.subr.mxu0 0.0
    %193 = vmatpush1.msra.mxu0 0.0
    %194 = vmatprep.subr.mxu0 0.0
    %195 = vmatpush1.msra.mxu0 0.0
    %196 = vmatprep.subr.mxu0 0.0
    %197 = vmatpush1.msra.mxu0 0.0
    %198 = vmatprep.subr.mxu0 0.0
    %199 = vmatpush1.msra.mxu0 0.0
    %200 = vmatprep.subr.mxu0 0.0
    %201 = vmatpush1.msra.mxu0 0.0
    %202 = vmatprep.subr.mxu0 0.0
    %203 = vmatpush1.msra.mxu0 0.0
    %204 = vmatprep.subr.mxu0 0.0
    %205 = vmatpush1.msra.mxu0 0.0
    %206 = vmatprep.subr.mxu0 0.0
    %207 = vmatpush1.msra.mxu0 %v176
    %208 = vmatprep.subr.mxu0 0.0
    %209 = vmatpush1.msra.mxu0 %v159
    %210 = vmatprep.subr.mxu0 0.0
    %211 = vmatpush2.msra.mxu0 0.0
    %212 = vmatprep.subr.mxu0 0.0
    %213 = vmatpush2.msra.mxu0 0.0
    %214 = vmatprep.subr.mxu0 0.0
    %215 = vmatpush2.msra.mxu0 0.0
    %216 = vmatprep.subr.mxu0 0.0
    %217 = vmatpush2.msra.mxu0 0.0
    %218 = vmatprep.subr.mxu0 0.0
    %219 = vmatpush2.msra.mxu0 0.0
    %220 = vmatprep.subr.mxu0 0.0
    %221 = vmatpush2.msra.mxu0 0.0
    %222 = vmatprep.subr.mxu0 0.0
    %223 = vmatpush2.msra.mxu0 0.0
    %224 = vmatprep.subr.mxu0 0.0
    %225 = vmatpush2.msra.mxu0 0.0
    %226 = vmatprep.subr.mxu0 0.0
    %227 = vmatpush2.msra.mxu0 0.0
    %228 = vmatprep.subr.mxu0 0.0
    %229 = vmatpush2.msra.mxu0 0.0
    %230 = vmatprep.subr.mxu0 0.0
    %231 = vmatpush2.msra.mxu0 0.0
    %232 = vmatprep.subr.mxu0 0.0
    %233 = vmatpush2.msra.mxu0 0.0
    %234 = vmatprep.subr.mxu0 0.0
    %235 = vmatpush2.msra.mxu0 0.0
    %236 = vmatprep.subr.mxu0 0.0
    %237 = vmatpush2.msra.mxu0 0.0
    %238 = vmatprep.subr.mxu0 0.0
    %239 = vmatpush2.msra.mxu0 0.0
    %240 = vmatprep.subr.mxu0 0.0
    %241 = vmatpush2.msra.mxu0 0.0
    %242 = vmatprep.mubr.f32.mxu0 0.0
    %243 = vmatmul.mubr.f32.gmra.mxu0 %v169
    %v244 = vpop.f32.mrf.mxu0
    %v245 = vadd.f32 0.0, %v244
    %v246 = vpop.f32.mrf.mxu0
    %247 = vmatprep.mubr.f32.mxu0 0.0
    %248 = vmatmul.mubr.f32.gmra.mxu0 %v172
    %v249 = vpop.f32.mrf.mxu0
    %v250 = vadd.f32 0.0, %v249
    %v251 = vpop.f32.mrf.mxu0
    %252 = vdwg.mxu0
    %v253 = vsel %vm167, %v49, 0.0
    %254 = vadd.xlane.f32.xlu0 %v253
    %v255 = vpop.xlane.xlu0 %254
    %v256 = vsel %vm167, %v50, 0.0
    %257 = vadd.xlane.f32.xlu0 %v256
    %v258 = vpop.xlane.xlu0 %257
    %v259 = vmax.f32 %v255, 1.0
    %v260 = vmax.f32 %v258, 1.0
    %v261 = vrcp.pop %v259
    %v262 = vmul.f32 %v245, %v261
    %v263 = vrcp.pop %v260
    %v264 = vmul.f32 %v250, %v263
    %v265 = vld [vmem:[%s7] sm:$0x1]
    %v266 = vld [vmem:[#allocation2] sm:$0x1]
    %v267 = vld [vmem:[#allocation3] sm:$0xff]
    %v268 = vld [vmem:[#allocation3 + $0x8] sm:$0xff]
    %v269 = vld [vmem:[%s6] sm:$0xff]
    %v270 = vld [vmem:[%s6 + $0x8] sm:$0xff]
    %v271 = vld [vmem:[%s6 + $0x10] sm:$0xff]
    %v272 = vld [vmem:[%s6 + $0x18] sm:$0xff]
    %v274 = vsel %vm85, %v267, 0
    %v277 = vsel %vm85, %v268, 0
    %279 = vmatprep.subr.mxu0 0.0
    %280 = vmatpush1.msra.mxu0 0.0
    %281 = vmatprep.subr.mxu0 0.0
    %282 = vmatpush1.msra.mxu0 0.0
    %283 = vmatprep.subr.mxu0 0.0
    %284 = vmatpush1.msra.mxu0 0.0
    %285 = vmatprep.subr.mxu0 0.0
    %286 = vmatpush1.msra.mxu0 0.0
    %287 = vmatprep.subr.mxu0 0.0
    %288 = vmatpush1.msra.mxu0 0.0
    %289 = vmatprep.subr.mxu0 0.0
    %290 = vmatpush1.msra.mxu0 0.0
    %291 = vmatprep.subr.mxu0 0.0
    %292 = vmatpush1.msra.mxu0 0.0
    %293 = vmatprep.subr.mxu0 0.0
    %294 = vmatpush1.msra.mxu0 0.0
    %295 = vmatprep.subr.mxu0 0.0
    %296 = vmatpush1.msra.mxu0 0.0
    %297 = vmatprep.subr.mxu0 0.0
    %298 = vmatpush1.msra.mxu0 0.0
    %299 = vmatprep.subr.mxu0 0.0
    %300 = vmatpush1.msra.mxu0 0.0
    %301 = vmatprep.subr.mxu0 0.0
    %302 = vmatpush1.msra.mxu0 0.0
    %303 = vmatprep.subr.mxu0 0.0
    %304 = vmatpush1.msra.mxu0 0.0
    %305 = vmatprep.subr.mxu0 0.0
    %306 = vmatpush1.msra.mxu0 0.0
    %307 = vmatprep.subr.mxu0 0.0
    %308 = vmatpush1.msra.mxu0 %v264
    %309 = vmatprep.subr.mxu0 0.0
    %310 = vmatpush1.msra.mxu0 %v262
    %311 = vmatprep.subr.mxu0 0.0
    %312 = vmatpush2.msra.mxu0 0.0
    %313 = vmatprep.subr.mxu0 0.0
    %314 = vmatpush2.msra.mxu0 0.0
    %315 = vmatprep.subr.mxu0 0.0
    %316 = vmatpush2.msra.mxu0 0.0
    %317 = vmatprep.subr.mxu0 0.0
    %318 = vmatpush2.msra.mxu0 0.0
    %319 = vmatprep.subr.mxu0 0.0
    %320 = vmatpush2.msra.mxu0 0.0
    %321 = vmatprep.subr.mxu0 0.0
    %322 = vmatpush2.msra.mxu0 0.0
    %323 = vmatprep.subr.mxu0 0.0
    %324 = vmatpush2.msra.mxu0 0.0
    %325 = vmatprep.subr.mxu0 0.0
    %326 = vmatpush2.msra.mxu0 0.0
    %327 = vmatprep.subr.mxu0 0.0
    %328 = vmatpush2.msra.mxu0 0.0
    %329 = vmatprep.subr.mxu0 0.0
    %330 = vmatpush2.msra.mxu0 0.0
    %331 = vmatprep.subr.mxu0 0.0
    %332 = vmatpush2.msra.mxu0 0.0
    %333 = vmatprep.subr.mxu0 0.0
    %334 = vmatpush2.msra.mxu0 0.0
    %335 = vmatprep.subr.mxu0 0.0
    %336 = vmatpush2.msra.mxu0 0.0
    %337 = vmatprep.subr.mxu0 0.0
    %338 = vmatpush2.msra.mxu0 0.0
    %339 = vmatprep.subr.mxu0 0.0
    %340 = vmatpush2.msra.mxu0 0.0
    %341 = vmatprep.subr.mxu0 0.0
    %342 = vmatpush2.msra.mxu0 0.0
    %343 = vmatprep.mubr.f32.mxu0 0.0
    %344 = vmatmul.mubr.f32.gmra.mxu0 %v274
    %v345 = vpop.f32.mrf.mxu0
    %v346 = vadd.f32 0.0, %v345
    %v347 = vpop.f32.mrf.mxu0
    %348 = vmatprep.mubr.f32.mxu0 0.0
    %349 = vmatmul.mubr.f32.gmra.mxu0 %v277
    %v350 = vpop.f32.mrf.mxu0
    %v351 = vadd.f32 0.0, %v350
    %v352 = vpop.f32.mrf.mxu0
    %353 = vdwg.mxu0
    %vm354 = vcmask 261120
    %v356 = vsel %vm354, %v346, 0
    %v359 = vsel %vm354, %v351, 0
    %361 = vmatprep.subr.mxu0 0.0
    %362 = vmatpush1.msra.mxu0 0.0
    %363 = vmatprep.subr.mxu0 0.0
    %364 = vmatpush1.msra.mxu0 0.0
    %365 = vmatprep.subr.mxu0 0.0
    %366 = vmatpush1.msra.mxu0 0.0
    %367 = vmatprep.subr.mxu0 0.0
    %368 = vmatpush1.msra.mxu0 0.0
    %369 = vmatprep.subr.mxu0 0.0
    %370 = vmatpush1.msra.mxu0 0.0
    %371 = vmatprep.subr.mxu0 0.0
    %372 = vmatpush1.msra.mxu0 0.0
    %373 = vmatprep.subr.mxu0 0.0
    %374 = vmatpush1.msra.mxu0 0.0
    %375 = vmatprep.subr.mxu0 0.0
    %376 = vmatpush1.msra.mxu0 0.0
    %377 = vmatprep.subr.mxu0 0.0
    %378 = vmatpush1.msra.mxu0 0.0
    %379 = vmatprep.subr.mxu0 0.0
    %380 = vmatpush1.msra.mxu0 0.0
    %381 = vmatprep.subr.mxu0 0.0
    %382 = vmatpush1.msra.mxu0 0.0
    %383 = vmatprep.subr.mxu0 0.0
    %384 = vmatpush1.msra.mxu0 0.0
    %385 = vmatprep.subr.mxu0 0.0
    %386 = vmatpush1.msra.mxu0 %v272
    %387 = vmatprep.subr.mxu0 0.0
    %388 = vmatpush1.msra.mxu0 %v271
    %389 = vmatprep.subr.mxu0 0.0
    %390 = vmatpush1.msra.mxu0 %v270
    %391 = vmatprep.subr.mxu0 0.0
    %392 = vmatpush1.msra.mxu0 %v269
    %393 = vmatprep.subr.mxu0 0.0
    %394 = vmatpush2.msra.mxu0 0.0
    %395 = vmatprep.subr.mxu0 0.0
    %396 = vmatpush2.msra.mxu0 0.0
    %397 = vmatprep.subr.mxu0 0.0
    %398 = vmatpush2.msra.mxu0 0.0
    %399 = vmatprep.subr.mxu0 0.0
    %400 = vmatpush2.msra.mxu0 0.0
    %401 = vmatprep.subr.mxu0 0.0
    %402 = vmatpush2.msra.mxu0 0.0
    %403 = vmatprep.subr.mxu0 0.0
    %404 = vmatpush2.msra.mxu0 0.0
    %405 = vmatprep.subr.mxu0 0.0
    %406 = vmatpush2.msra.mxu0 0.0
    %407 = vmatprep.subr.mxu0 0.0
    %408 = vmatpush2.msra.mxu0 0.0
    %409 = vmatprep.subr.mxu0 0.0
    %410 = vmatpush2.msra.mxu0 0.0
    %411 = vmatprep.subr.mxu0 0.0
    %412 = vmatpush2.msra.mxu0 0.0
    %413 = vmatprep.subr.mxu0 0.0
    %414 = vmatpush2.msra.mxu0 0.0
    %415 = vmatprep.subr.mxu0 0.0
    %416 = vmatpush2.msra.mxu0 0.0
    %417 = vmatprep.subr.mxu0 0.0
    %418 = vmatpush2.msra.mxu0 0.0
    %419 = vmatprep.subr.mxu0 0.0
    %420 = vmatpush2.msra.mxu0 0.0
    %421 = vmatprep.subr.mxu0 0.0
    %422 = vmatpush2.msra.mxu0 0.0
    %423 = vmatprep.subr.mxu0 0.0
    %424 = vmatpush2.msra.mxu0 0.0
    %425 = vmatprep.mubr.f32.mxu0 0.0
    %426 = vmatmul.mubr.f32.gmra.mxu0 %v356
    %v427 = vpop.f32.mrf.mxu0
    %v428 = vadd.f32 0.0, %v427
    %v429 = vpop.f32.mrf.mxu0
    %430 = vmatprep.mubr.f32.mxu0 0.0
    %431 = vmatmul.mubr.f32.gmra.mxu0 %v359
    %v432 = vpop.f32.mrf.mxu0
    %v433 = vadd.f32 0.0, %v432
    %v434 = vpop.f32.mrf.mxu0
    %435 = vdwg.mxu0
    %v436 = vmax.f32 %v428, 0.0
    %v437 = vmax.f32 %v433, 0.0
    %438 = vmatprep.subr.mxu0 0.0
    %439 = vmatpush1.msra.mxu0 0.0
    %440 = vmatprep.subr.mxu0 0.0
    %441 = vmatpush1.msra.mxu0 0.0
    %442 = vmatprep.subr.mxu0 0.0
    %443 = vmatpush1.msra.mxu0 0.0
    %444 = vmatprep.subr.mxu0 0.0
    %445 = vmatpush1.msra.mxu0 0.0
    %446 = vmatprep.subr.mxu0 0.0
    %447 = vmatpush1.msra.mxu0 0.0
    %448 = vmatprep.subr.mxu0 0.0
    %449 = vmatpush1.msra.mxu0 0.0
    %450 = vmatprep.subr.mxu0 0.0
    %451 = vmatpush1.msra.mxu0 0.0
    %452 = vmatprep.subr.mxu0 0.0
    %453 = vmatpush1.msra.mxu0 0.0
    %454 = vmatprep.subr.mxu0 0.0
    %455 = vmatpush1.msra.mxu0 0.0
    %456 = vmatprep.subr.mxu0 0.0
    %457 = vmatpush1.msra.mxu0 0.0
    %458 = vmatprep.subr.mxu0 0.0
    %459 = vmatpush1.msra.mxu0 0.0
    %460 = vmatprep.subr.mxu0 0.0
    %461 = vmatpush1.msra.mxu0 0.0
    %462 = vmatprep.subr.mxu0 0.0
    %463 = vmatpush1.msra.mxu0 0.0
    %464 = vmatprep.subr.mxu0 0.0
    %465 = vmatpush1.msra.mxu0 0.0
    %466 = vmatprep.subr.mxu0 0.0
    %467 = vmatpush1.msra.mxu0 %v437
    %468 = vmatprep.subr.mxu0 0.0
    %469 = vmatpush1.msra.mxu0 %v436
    %470 = vmatprep.subr.mxu0 0.0
    %471 = vmatpush2.msra.mxu0 0.0
    %472 = vmatprep.subr.mxu0 0.0
    %473 = vmatpush2.msra.mxu0 0.0
    %474 = vmatprep.subr.mxu0 0.0
    %475 = vmatpush2.msra.mxu0 0.0
    %476 = vmatprep.subr.mxu0 0.0
    %477 = vmatpush2.msra.mxu0 0.0
    %478 = vmatprep.subr.mxu0 0.0
    %479 = vmatpush2.msra.mxu0 0.0
    %480 = vmatprep.subr.mxu0 0.0
    %481 = vmatpush2.msra.mxu0 0.0
    %482 = vmatprep.subr.mxu0 0.0
    %483 = vmatpush2.msra.mxu0 0.0
    %484 = vmatprep.subr.mxu0 0.0
    %485 = vmatpush2.msra.mxu0 0.0
    %486 = vmatprep.subr.mxu0 0.0
    %487 = vmatpush2.msra.mxu0 0.0
    %488 = vmatprep.subr.mxu0 0.0
    %489 = vmatpush2.msra.mxu0 0.0
    %490 = vmatprep.subr.mxu0 0.0
    %491 = vmatpush2.msra.mxu0 0.0
    %492 = vmatprep.subr.mxu0 0.0
    %493 = vmatpush2.msra.mxu0 0.0
    %494 = vmatprep.subr.mxu0 0.0
    %495 = vmatpush2.msra.mxu0 0.0
    %496 = vmatprep.subr.mxu0 0.0
    %497 = vmatpush2.msra.mxu0 0.0
    %498 = vmatprep.subr.mxu0 0.0
    %499 = vmatpush2.msra.mxu0 0.0
    %500 = vmatprep.subr.mxu0 0.0
    %501 = vmatpush2.msra.mxu0 0.0
    %502 = vmatprep.mubr.f32.mxu0 0.0
    %503 = vmatmul.mubr.f32.gmra.mxu0 %v274
    %v504 = vpop.f32.mrf.mxu0
    %v505 = vadd.f32 0.0, %v504
    %v506 = vpop.f32.mrf.mxu0
    %507 = vmatprep.mubr.f32.mxu0 0.0
    %508 = vmatmul.mubr.f32.gmra.mxu0 %v277
    %v509 = vpop.f32.mrf.mxu0
    %v510 = vadd.f32 0.0, %v509
    %v511 = vpop.f32.mrf.mxu0
    %512 = vdwg.mxu0
    %v514 = vsel %vm354, %v505, 0
    %v517 = vsel %vm354, %v510, 0
    %519 = vmatprep.subr.mxu0 0.0
    %520 = vmatpush1.msra.mxu0 0.0
    %521 = vmatprep.subr.mxu0 0.0
    %522 = vmatpush1.msra.mxu0 0.0
    %523 = vmatprep.subr.mxu0 0.0
    %524 = vmatpush1.msra.mxu0 0.0
    %525 = vmatprep.subr.mxu0 0.0
    %526 = vmatpush1.msra.mxu0 0.0
    %527 = vmatprep.subr.mxu0 0.0
    %528 = vmatpush1.msra.mxu0 0.0
    %529 = vmatprep.subr.mxu0 0.0
    %530 = vmatpush1.msra.mxu0 0.0
    %531 = vmatprep.subr.mxu0 0.0
    %532 = vmatpush1.msra.mxu0 0.0
    %533 = vmatprep.subr.mxu0 0.0
    %534 = vmatpush1.msra.mxu0 0.0
    %535 = vmatprep.subr.mxu0 0.0
    %536 = vmatpush1.msra.mxu0 0.0
    %537 = vmatprep.subr.mxu0 0.0
    %538 = vmatpush1.msra.mxu0 0.0
    %539 = vmatprep.subr.mxu0 0.0
    %540 = vmatpush1.msra.mxu0 0.0
    %541 = vmatprep.subr.mxu0 0.0
    %542 = vmatpush1.msra.mxu0 0.0
    %543 = vmatprep.subr.mxu0 0.0
    %544 = vmatpush1.msra.mxu0 %v272
    %545 = vmatprep.subr.mxu0 0.0
    %546 = vmatpush1.msra.mxu0 %v271
    %547 = vmatprep.subr.mxu0 0.0
    %548 = vmatpush1.msra.mxu0 %v270
    %549 = vmatprep.subr.mxu0 0.0
    %550 = vmatpush1.msra.mxu0 %v269
    %551 = vmatprep.subr.mxu0 0.0
    %552 = vmatpush2.msra.mxu0 0.0
    %553 = vmatprep.subr.mxu0 0.0
    %554 = vmatpush2.msra.mxu0 0.0
    %555 = vmatprep.subr.mxu0 0.0
    %556 = vmatpush2.msra.mxu0 0.0
    %557 = vmatprep.subr.mxu0 0.0
    %558 = vmatpush2.msra.mxu0 0.0
    %559 = vmatprep.subr.mxu0 0.0
    %560 = vmatpush2.msra.mxu0 0.0
    %561 = vmatprep.subr.mxu0 0.0
    %562 = vmatpush2.msra.mxu0 0.0
    %563 = vmatprep.subr.mxu0 0.0
    %564 = vmatpush2.msra.mxu0 0.0
    %565 = vmatprep.subr.mxu0 0.0
    %566 = vmatpush2.msra.mxu0 0.0
    %567 = vmatprep.subr.mxu0 0.0
    %568 = vmatpush2.msra.mxu0 0.0
    %569 = vmatprep.subr.mxu0 0.0
    %570 = vmatpush2.msra.mxu0 0.0
    %571 = vmatprep.subr.mxu0 0.0
    %572 = vmatpush2.msra.mxu0 0.0
    %573 = vmatprep.subr.mxu0 0.0
    %574 = vmatpush2.msra.mxu0 0.0
    %575 = vmatprep.subr.mxu0 0.0
    %576 = vmatpush2.msra.mxu0 0.0
    %577 = vmatprep.subr.mxu0 0.0
    %578 = vmatpush2.msra.mxu0 0.0
    %579 = vmatprep.subr.mxu0 0.0
    %580 = vmatpush2.msra.mxu0 0.0
    %581 = vmatprep.subr.mxu0 0.0
    %582 = vmatpush2.msra.mxu0 0.0
    %583 = vmatprep.mubr.f32.mxu0 0.0
    %584 = vmatmul.mubr.f32.gmra.mxu0 %v514
    %v585 = vpop.f32.mrf.mxu0
    %v586 = vadd.f32 0.0, %v585
    %v587 = vpop.f32.mrf.mxu0
    %588 = vmatprep.mubr.f32.mxu0 0.0
    %589 = vmatmul.mubr.f32.gmra.mxu0 %v517
    %v590 = vpop.f32.mrf.mxu0
    %v591 = vadd.f32 0.0, %v590
    %v592 = vpop.f32.mrf.mxu0
    %593 = vdwg.mxu0
    %v594 = vmax.f32 %v586, 0.0
    %v595 = vmax.f32 %v591, 0.0
    %596 = vmatprep.subr.mxu0 0.0
    %597 = vmatpush1.msra.mxu0 0.0
    %598 = vmatprep.subr.mxu0 0.0
    %599 = vmatpush1.msra.mxu0 0.0
    %600 = vmatprep.subr.mxu0 0.0
    %601 = vmatpush1.msra.mxu0 0.0
    %602 = vmatprep.subr.mxu0 0.0
    %603 = vmatpush1.msra.mxu0 0.0
    %604 = vmatprep.subr.mxu0 0.0
    %605 = vmatpush1.msra.mxu0 0.0
    %606 = vmatprep.subr.mxu0 0.0
    %607 = vmatpush1.msra.mxu0 0.0
    %608 = vmatprep.subr.mxu0 0.0
    %609 = vmatpush1.msra.mxu0 0.0
    %610 = vmatprep.subr.mxu0 0.0
    %611 = vmatpush1.msra.mxu0 0.0
    %612 = vmatprep.subr.mxu0 0.0
    %613 = vmatpush1.msra.mxu0 0.0
    %614 = vmatprep.subr.mxu0 0.0
    %615 = vmatpush1.msra.mxu0 0.0
    %616 = vmatprep.subr.mxu0 0.0
    %617 = vmatpush1.msra.mxu0 0.0
    %618 = vmatprep.subr.mxu0 0.0
    %619 = vmatpush1.msra.mxu0 0.0
    %620 = vmatprep.subr.mxu0 0.0
    %621 = vmatpush1.msra.mxu0 0.0
    %622 = vmatprep.subr.mxu0 0.0
    %623 = vmatpush1.msra.mxu0 0.0
    %624 = vmatprep.subr.mxu0 0.0
    %625 = vmatpush1.msra.mxu0 %v595
    %626 = vmatprep.subr.mxu0 0.0
    %627 = vmatpush1.msra.mxu0 %v594
    %628 = vmatprep.subr.mxu0 0.0
    %629 = vmatpush2.msra.mxu0 0.0
    %630 = vmatprep.subr.mxu0 0.0
    %631 = vmatpush2.msra.mxu0 0.0
    %632 = vmatprep.subr.mxu0 0.0
    %633 = vmatpush2.msra.mxu0 0.0
    %634 = vmatprep.subr.mxu0 0.0
    %635 = vmatpush2.msra.mxu0 0.0
    %636 = vmatprep.subr.mxu0 0.0
    %637 = vmatpush2.msra.mxu0 0.0
    %638 = vmatprep.subr.mxu0 0.0
    %639 = vmatpush2.msra.mxu0 0.0
    %640 = vmatprep.subr.mxu0 0.0
    %641 = vmatpush2.msra.mxu0 0.0
    %642 = vmatprep.subr.mxu0 0.0
    %643 = vmatpush2.msra.mxu0 0.0
    %644 = vmatprep.subr.mxu0 0.0
    %645 = vmatpush2.msra.mxu0 0.0
    %646 = vmatprep.subr.mxu0 0.0
    %647 = vmatpush2.msra.mxu0 0.0
    %648 = vmatprep.subr.mxu0 0.0
    %649 = vmatpush2.msra.mxu0 0.0
    %650 = vmatprep.subr.mxu0 0.0
    %651 = vmatpush2.msra.mxu0 0.0
    %652 = vmatprep.subr.mxu0 0.0
    %653 = vmatpush2.msra.mxu0 0.0
    %654 = vmatprep.subr.mxu0 0.0
    %655 = vmatpush2.msra.mxu0 0.0
    %656 = vmatprep.subr.mxu0 0.0
    %657 = vmatpush2.msra.mxu0 0.0
    %658 = vmatprep.subr.mxu0 0.0
    %659 = vmatpush2.msra.mxu0 0.0
    %660 = vmatprep.mubr.f32.mxu0 0.0
    %661 = vmatmul.mubr.f32.gmra.mxu0 %v274
    %v662 = vpop.f32.mrf.mxu0
    %v663 = vadd.f32 0.0, %v662
    %v664 = vpop.f32.mrf.mxu0
    %665 = vmatprep.mubr.f32.mxu0 0.0
    %666 = vmatmul.mubr.f32.gmra.mxu0 %v277
    %v667 = vpop.f32.mrf.mxu0
    %v668 = vadd.f32 0.0, %v667
    %v669 = vpop.f32.mrf.mxu0
    %670 = vdwg.mxu0
    %v672 = vsel %vm354, %v663, 0
    %v675 = vsel %vm354, %v668, 0
    %677 = vmatprep.subr.mxu0 0.0
    %678 = vmatpush1.msra.mxu0 0.0
    %679 = vmatprep.subr.mxu0 0.0
    %680 = vmatpush1.msra.mxu0 0.0
    %681 = vmatprep.subr.mxu0 0.0
    %682 = vmatpush1.msra.mxu0 0.0
    %683 = vmatprep.subr.mxu0 0.0
    %684 = vmatpush1.msra.mxu0 0.0
    %685 = vmatprep.subr.mxu0 0.0
    %686 = vmatpush1.msra.mxu0 0.0
    %687 = vmatprep.subr.mxu0 0.0
    %688 = vmatpush1.msra.mxu0 0.0
    %689 = vmatprep.subr.mxu0 0.0
    %690 = vmatpush1.msra.mxu0 0.0
    %691 = vmatprep.subr.mxu0 0.0
    %692 = vmatpush1.msra.mxu0 0.0
    %693 = vmatprep.subr.mxu0 0.0
    %694 = vmatpush1.msra.mxu0 0.0
    %695 = vmatprep.subr.mxu0 0.0
    %696 = vmatpush1.msra.mxu0 0.0
    %697 = vmatprep.subr.mxu0 0.0
    %698 = vmatpush1.msra.mxu0 0.0
    %699 = vmatprep.subr.mxu0 0.0
    %700 = vmatpush1.msra.mxu0 0.0
    %701 = vmatprep.subr.mxu0 0.0
    %702 = vmatpush1.msra.mxu0 %v272
    %703 = vmatprep.subr.mxu0 0.0
    %704 = vmatpush1.msra.mxu0 %v271
    %705 = vmatprep.subr.mxu0 0.0
    %706 = vmatpush1.msra.mxu0 %v270
    %707 = vmatprep.subr.mxu0 0.0
    %708 = vmatpush1.msra.mxu0 %v269
    %709 = vmatprep.subr.mxu0 0.0
    %710 = vmatpush2.msra.mxu0 0.0
    %711 = vmatprep.subr.mxu0 0.0
    %712 = vmatpush2.msra.mxu0 0.0
    %713 = vmatprep.subr.mxu0 0.0
    %714 = vmatpush2.msra.mxu0 0.0
    %715 = vmatprep.subr.mxu0 0.0
    %716 = vmatpush2.msra.mxu0 0.0
    %717 = vmatprep.subr.mxu0 0.0
    %718 = vmatpush2.msra.mxu0 0.0
    %719 = vmatprep.subr.mxu0 0.0
    %720 = vmatpush2.msra.mxu0 0.0
    %721 = vmatprep.subr.mxu0 0.0
    %722 = vmatpush2.msra.mxu0 0.0
    %723 = vmatprep.subr.mxu0 0.0
    %724 = vmatpush2.msra.mxu0 0.0
    %725 = vmatprep.subr.mxu0 0.0
    %726 = vmatpush2.msra.mxu0 0.0
    %727 = vmatprep.subr.mxu0 0.0
    %728 = vmatpush2.msra.mxu0 0.0
    %729 = vmatprep.subr.mxu0 0.0
    %730 = vmatpush2.msra.mxu0 0.0
    %731 = vmatprep.subr.mxu0 0.0
    %732 = vmatpush2.msra.mxu0 0.0
    %733 = vmatprep.subr.mxu0 0.0
    %734 = vmatpush2.msra.mxu0 0.0
    %735 = vmatprep.subr.mxu0 0.0
    %736 = vmatpush2.msra.mxu0 0.0
    %737 = vmatprep.subr.mxu0 0.0
    %738 = vmatpush2.msra.mxu0 0.0
    %739 = vmatprep.subr.mxu0 0.0
    %740 = vmatpush2.msra.mxu0 0.0
    %741 = vmatprep.mubr.f32.mxu0 0.0
    %742 = vmatmul.mubr.f32.gmra.mxu0 %v672
    %v743 = vpop.f32.mrf.mxu0
    %v744 = vadd.f32 0.0, %v743
    %v745 = vpop.f32.mrf.mxu0
    %746 = vmatprep.mubr.f32.mxu0 0.0
    %747 = vmatmul.mubr.f32.gmra.mxu0 %v675
    %v748 = vpop.f32.mrf.mxu0
    %v749 = vadd.f32 0.0, %v748
    %v750 = vpop.f32.mrf.mxu0
    %751 = vdwg.mxu0
    %v752 = vmax.f32 %v744, 0.0
    %v753 = vmax.f32 %v749, 0.0
    %v755 = vlaneseq
    %v756 = vshrl.u32 %v755, 7
    %v757 = vsub.s32 0, %v756
    %v758 = vrot.slane %v265, %v757
    %v760 = vmul.f32 %v752, %v758
    %v761 = vmul.f32 %v753, %v758
    %v762 = vsel %vm354, %v760, 0.0
    %763 = vadd.xlane.f32.xlu0 %v762
    %v764 = vpop.xlane.xlu0 %763
    %v765 = vsel %vm354, %v761, 0.0
    %766 = vadd.xlane.f32.xlu0 %v765
    %v767 = vpop.xlane.xlu0 %766
    %v769 = vlaneseq
    %v770 = vshrl.u32 %v769, 7
    %v771 = vsub.s32 0, %v770
    %v772 = vrot.slane %v266, %v771
    %v774 = vadd.f32 %v764, %v772
    %v775 = vadd.f32 %v767, %v772
    %s776 = scalar_lea.vmem [#allocation3], 16
    %v777 = vld [vmem:[%s776] sm:$0xff]
    %v778 = vld [vmem:[%s776 + $0x8] sm:$0xff]
    %s779 = scalar_lea.vmem %s6, 32
    %v780 = vld [vmem:[%s779] sm:$0xff]
    %v781 = vld [vmem:[%s779 + $0x8] sm:$0xff]
    %v782 = vld [vmem:[%s779 + $0x10] sm:$0xff]
    %v783 = vld [vmem:[%s779 + $0x18] sm:$0xff]
    %v785 = vsel %vm85, %v777, 0
    %v788 = vsel %vm85, %v778, 0
    %790 = vmatprep.subr.mxu0 0.0
    %791 = vmatpush1.msra.mxu0 0.0
    %792 = vmatprep.subr.mxu0 0.0
    %793 = vmatpush1.msra.mxu0 0.0
    %794 = vmatprep.subr.mxu0 0.0
    %795 = vmatpush1.msra.mxu0 0.0
    %796 = vmatprep.subr.mxu0 0.0
    %797 = vmatpush1.msra.mxu0 0.0
    %798 = vmatprep.subr.mxu0 0.0
    %799 = vmatpush1.msra.mxu0 0.0
    %800 = vmatprep.subr.mxu0 0.0
    %801 = vmatpush1.msra.mxu0 0.0
    %802 = vmatprep.subr.mxu0 0.0
    %803 = vmatpush1.msra.mxu0 0.0
    %804 = vmatprep.subr.mxu0 0.0
    %805 = vmatpush1.msra.mxu0 0.0
    %806 = vmatprep.subr.mxu0 0.0
    %807 = vmatpush1.msra.mxu0 0.0
    %808 = vmatprep.subr.mxu0 0.0
    %809 = vmatpush1.msra.mxu0 0.0
    %810 = vmatprep.subr.mxu0 0.0
    %811 = vmatpush1.msra.mxu0 0.0
    %812 = vmatprep.subr.mxu0 0.0
    %813 = vmatpush1.msra.mxu0 0.0
    %814 = vmatprep.subr.mxu0 0.0
    %815 = vmatpush1.msra.mxu0 0.0
    %816 = vmatprep.subr.mxu0 0.0
    %817 = vmatpush1.msra.mxu0 0.0
    %818 = vmatprep.subr.mxu0 0.0
    %819 = vmatpush1.msra.mxu0 %v264
    %820 = vmatprep.subr.mxu0 0.0
    %821 = vmatpush1.msra.mxu0 %v262
    %822 = vmatprep.subr.mxu0 0.0
    %823 = vmatpush2.msra.mxu0 0.0
    %824 = vmatprep.subr.mxu0 0.0
    %825 = vmatpush2.msra.mxu0 0.0
    %826 = vmatprep.subr.mxu0 0.0
    %827 = vmatpush2.msra.mxu0 0.0
    %828 = vmatprep.subr.mxu0 0.0
    %829 = vmatpush2.msra.mxu0 0.0
    %830 = vmatprep.subr.mxu0 0.0
    %831 = vmatpush2.msra.mxu0 0.0
    %832 = vmatprep.subr.mxu0 0.0
    %833 = vmatpush2.msra.mxu0 0.0
    %834 = vmatprep.subr.mxu0 0.0
    %835 = vmatpush2.msra.mxu0 0.0
    %836 = vmatprep.subr.mxu0 0.0
    %837 = vmatpush2.msra.mxu0 0.0
    %838 = vmatprep.subr.mxu0 0.0
    %839 = vmatpush2.msra.mxu0 0.0
    %840 = vmatprep.subr.mxu0 0.0
    %841 = vmatpush2.msra.mxu0 0.0
    %842 = vmatprep.subr.mxu0 0.0
    %843 = vmatpush2.msra.mxu0 0.0
    %844 = vmatprep.subr.mxu0 0.0
    %845 = vmatpush2.msra.mxu0 0.0
    %846 = vmatprep.subr.mxu0 0.0
    %847 = vmatpush2.msra.mxu0 0.0
    %848 = vmatprep.subr.mxu0 0.0
    %849 = vmatpush2.msra.mxu0 0.0
    %850 = vmatprep.subr.mxu0 0.0
    %851 = vmatpush2.msra.mxu0 0.0
    %852 = vmatprep.subr.mxu0 0.0
    %853 = vmatpush2.msra.mxu0 0.0
    %854 = vmatprep.mubr.f32.mxu0 0.0
    %855 = vmatmul.mubr.f32.gmra.mxu0 %v785
    %v856 = vpop.f32.mrf.mxu0
    %v857 = vadd.f32 0.0, %v856
    %v858 = vpop.f32.mrf.mxu0
    %859 = vmatprep.mubr.f32.mxu0 0.0
    %860 = vmatmul.mubr.f32.gmra.mxu0 %v788
    %v861 = vpop.f32.mrf.mxu0
    %v862 = vadd.f32 0.0, %v861
    %v863 = vpop.f32.mrf.mxu0
    %864 = vdwg.mxu0
    %v866 = vsel %vm354, %v857, 0
    %v869 = vsel %vm354, %v862, 0
    %871 = vmatprep.subr.mxu0 0.0
    %872 = vmatpush1.msra.mxu0 0.0
    %873 = vmatprep.subr.mxu0 0.0
    %874 = vmatpush1.msra.mxu0 0.0
    %875 = vmatprep.subr.mxu0 0.0
    %876 = vmatpush1.msra.mxu0 0.0
    %877 = vmatprep.subr.mxu0 0.0
    %878 = vmatpush1.msra.mxu0 0.0
    %879 = vmatprep.subr.mxu0 0.0
    %880 = vmatpush1.msra.mxu0 0.0
    %881 = vmatprep.subr.mxu0 0.0
    %882 = vmatpush1.msra.mxu0 0.0
    %883 = vmatprep.subr.mxu0 0.0
    %884 = vmatpush1.msra.mxu0 0.0
    %885 = vmatprep.subr.mxu0 0.0
    %886 = vmatpush1.msra.mxu0 0.0
    %887 = vmatprep.subr.mxu0 0.0
    %888 = vmatpush1.msra.mxu0 0.0
    %889 = vmatprep.subr.mxu0 0.0
    %890 = vmatpush1.msra.mxu0 0.0
    %891 = vmatprep.subr.mxu0 0.0
    %892 = vmatpush1.msra.mxu0 0.0
    %893 = vmatprep.subr.mxu0 0.0
    %894 = vmatpush1.msra.mxu0 0.0
    %895 = vmatprep.subr.mxu0 0.0
    %896 = vmatpush1.msra.mxu0 %v783
    %897 = vmatprep.subr.mxu0 0.0
    %898 = vmatpush1.msra.mxu0 %v782
    %899 = vmatprep.subr.mxu0 0.0
    %900 = vmatpush1.msra.mxu0 %v781
    %901 = vmatprep.subr.mxu0 0.0
    %902 = vmatpush1.msra.mxu0 %v780
    %903 = vmatprep.subr.mxu0 0.0
    %904 = vmatpush2.msra.mxu0 0.0
    %905 = vmatprep.subr.mxu0 0.0
    %906 = vmatpush2.msra.mxu0 0.0
    %907 = vmatprep.subr.mxu0 0.0
    %908 = vmatpush2.msra.mxu0 0.0
    %909 = vmatprep.subr.mxu0 0.0
    %910 = vmatpush2.msra.mxu0 0.0
    %911 = vmatprep.subr.mxu0 0.0
    %912 = vmatpush2.msra.mxu0 0.0
    %913 = vmatprep.subr.mxu0 0.0
    %914 = vmatpush2.msra.mxu0 0.0
    %915 = vmatprep.subr.mxu0 0.0
    %916 = vmatpush2.msra.mxu0 0.0
    %917 = vmatprep.subr.mxu0 0.0
    %918 = vmatpush2.msra.mxu0 0.0
    %919 = vmatprep.subr.mxu0 0.0
    %920 = vmatpush2.msra.mxu0 0.0
    %921 = vmatprep.subr.mxu0 0.0
    %922 = vmatpush2.msra.mxu0 0.0
    %923 = vmatprep.subr.mxu0 0.0
    %924 = vmatpush2.msra.mxu0 0.0
    %925 = vmatprep.subr.mxu0 0.0
    %926 = vmatpush2.msra.mxu0 0.0
    %927 = vmatprep.subr.mxu0 0.0
    %928 = vmatpush2.msra.mxu0 0.0
    %929 = vmatprep.subr.mxu0 0.0
    %930 = vmatpush2.msra.mxu0 0.0
    %931 = vmatprep.subr.mxu0 0.0
    %932 = vmatpush2.msra.mxu0 0.0
    %933 = vmatprep.subr.mxu0 0.0
    %934 = vmatpush2.msra.mxu0 0.0
    %935 = vmatprep.mubr.f32.mxu0 0.0
    %936 = vmatmul.mubr.f32.gmra.mxu0 %v866
    %v937 = vpop.f32.mrf.mxu0
    %v938 = vadd.f32 0.0, %v937
    %v939 = vpop.f32.mrf.mxu0
    %940 = vmatprep.mubr.f32.mxu0 0.0
    %941 = vmatmul.mubr.f32.gmra.mxu0 %v869
    %v942 = vpop.f32.mrf.mxu0
    %v943 = vadd.f32 0.0, %v942
    %v944 = vpop.f32.mrf.mxu0
    %945 = vdwg.mxu0
    %v946 = vmax.f32 %v938, 0.0
    %v947 = vmax.f32 %v943, 0.0
    %948 = vmatprep.subr.mxu0 0.0
    %949 = vmatpush1.msra.mxu0 0.0
    %950 = vmatprep.subr.mxu0 0.0
    %951 = vmatpush1.msra.mxu0 0.0
    %952 = vmatprep.subr.mxu0 0.0
    %953 = vmatpush1.msra.mxu0 0.0
    %954 = vmatprep.subr.mxu0 0.0
    %955 = vmatpush1.msra.mxu0 0.0
    %956 = vmatprep.subr.mxu0 0.0
    %957 = vmatpush1.msra.mxu0 0.0
    %958 = vmatprep.subr.mxu0 0.0
    %959 = vmatpush1.msra.mxu0 0.0
    %960 = vmatprep.subr.mxu0 0.0
    %961 = vmatpush1.msra.mxu0 0.0
    %962 = vmatprep.subr.mxu0 0.0
    %963 = vmatpush1.msra.mxu0 0.0
    %964 = vmatprep.subr.mxu0 0.0
    %965 = vmatpush1.msra.mxu0 0.0
    %966 = vmatprep.subr.mxu0 0.0
    %967 = vmatpush1.msra.mxu0 0.0
    %968 = vmatprep.subr.mxu0 0.0
    %969 = vmatpush1.msra.mxu0 0.0
    %970 = vmatprep.subr.mxu0 0.0
    %971 = vmatpush1.msra.mxu0 0.0
    %972 = vmatprep.subr.mxu0 0.0
    %973 = vmatpush1.msra.mxu0 0.0
    %974 = vmatprep.subr.mxu0 0.0
    %975 = vmatpush1.msra.mxu0 0.0
    %976 = vmatprep.subr.mxu0 0.0
    %977 = vmatpush1.msra.mxu0 %v947
    %978 = vmatprep.subr.mxu0 0.0
    %979 = vmatpush1.msra.mxu0 %v946
    %980 = vmatprep.subr.mxu0 0.0
    %981 = vmatpush2.msra.mxu0 0.0
    %982 = vmatprep.subr.mxu0 0.0
    %983 = vmatpush2.msra.mxu0 0.0
    %984 = vmatprep.subr.mxu0 0.0
    %985 = vmatpush2.msra.mxu0 0.0
    %986 = vmatprep.subr.mxu0 0.0
    %987 = vmatpush2.msra.mxu0 0.0
    %988 = vmatprep.subr.mxu0 0.0
    %989 = vmatpush2.msra.mxu0 0.0
    %990 = vmatprep.subr.mxu0 0.0
    %991 = vmatpush2.msra.mxu0 0.0
    %992 = vmatprep.subr.mxu0 0.0
    %993 = vmatpush2.msra.mxu0 0.0
    %994 = vmatprep.subr.mxu0 0.0
    %995 = vmatpush2.msra.mxu0 0.0
    %996 = vmatprep.subr.mxu0 0.0
    %997 = vmatpush2.msra.mxu0 0.0
    %998 = vmatprep.subr.mxu0 0.0
    %999 = vmatpush2.msra.mxu0 0.0
    %1000 = vmatprep.subr.mxu0 0.0
    %1001 = vmatpush2.msra.mxu0 0.0
    %1002 = vmatprep.subr.mxu0 0.0
    %1003 = vmatpush2.msra.mxu0 0.0
    %1004 = vmatprep.subr.mxu0 0.0
    %1005 = vmatpush2.msra.mxu0 0.0
    %1006 = vmatprep.subr.mxu0 0.0
    %1007 = vmatpush2.msra.mxu0 0.0
    %1008 = vmatprep.subr.mxu0 0.0
    %1009 = vmatpush2.msra.mxu0 0.0
    %1010 = vmatprep.subr.mxu0 0.0
    %1011 = vmatpush2.msra.mxu0 0.0
    %1012 = vmatprep.mubr.f32.mxu0 0.0
    %1013 = vmatmul.mubr.f32.gmra.mxu0 %v785
    %v1014 = vpop.f32.mrf.mxu0
    %v1015 = vadd.f32 0.0, %v1014
    %v1016 = vpop.f32.mrf.mxu0
    %1017 = vmatprep.mubr.f32.mxu0 0.0
    %1018 = vmatmul.mubr.f32.gmra.mxu0 %v788
    %v1019 = vpop.f32.mrf.mxu0
    %v1020 = vadd.f32 0.0, %v1019
    %v1021 = vpop.f32.mrf.mxu0
    %1022 = vdwg.mxu0
    %v1024 = vsel %vm354, %v1015, 0
    %v1027 = vsel %vm354, %v1020, 0
    %1029 = vmatprep.subr.mxu0 0.0
    %1030 = vmatpush1.msra.mxu0 0.0
    %1031 = vmatprep.subr.mxu0 0.0
    %1032 = vmatpush1.msra.mxu0 0.0
    %1033 = vmatprep.subr.mxu0 0.0
    %1034 = vmatpush1.msra.mxu0 0.0
    %1035 = vmatprep.subr.mxu0 0.0
    %1036 = vmatpush1.msra.mxu0 0.0
    %1037 = vmatprep.subr.mxu0 0.0
    %1038 = vmatpush1.msra.mxu0 0.0
    %1039 = vmatprep.subr.mxu0 0.0
    %1040 = vmatpush1.msra.mxu0 0.0
    %1041 = vmatprep.subr.mxu0 0.0
    %1042 = vmatpush1.msra.mxu0 0.0
    %1043 = vmatprep.subr.mxu0 0.0
    %1044 = vmatpush1.msra.mxu0 0.0
    %1045 = vmatprep.subr.mxu0 0.0
    %1046 = vmatpush1.msra.mxu0 0.0
    %1047 = vmatprep.subr.mxu0 0.0
    %1048 = vmatpush1.msra.mxu0 0.0
    %1049 = vmatprep.subr.mxu0 0.0
    %1050 = vmatpush1.msra.mxu0 0.0
    %1051 = vmatprep.subr.mxu0 0.0
    %1052 = vmatpush1.msra.mxu0 0.0
    %1053 = vmatprep.subr.mxu0 0.0
    %1054 = vmatpush1.msra.mxu0 %v783
    %1055 = vmatprep.subr.mxu0 0.0
    %1056 = vmatpush1.msra.mxu0 %v782
    %1057 = vmatprep.subr.mxu0 0.0
    %1058 = vmatpush1.msra.mxu0 %v781
    %1059 = vmatprep.subr.mxu0 0.0
    %1060 = vmatpush1.msra.mxu0 %v780
    %1061 = vmatprep.subr.mxu0 0.0
    %1062 = vmatpush2.msra.mxu0 0.0
    %1063 = vmatprep.subr.mxu0 0.0
    %1064 = vmatpush2.msra.mxu0 0.0
    %1065 = vmatprep.subr.mxu0 0.0
    %1066 = vmatpush2.msra.mxu0 0.0
    %1067 = vmatprep.subr.mxu0 0.0
    %1068 = vmatpush2.msra.mxu0 0.0
    %1069 = vmatprep.subr.mxu0 0.0
    %1070 = vmatpush2.msra.mxu0 0.0
    %1071 = vmatprep.subr.mxu0 0.0
    %1072 = vmatpush2.msra.mxu0 0.0
    %1073 = vmatprep.subr.mxu0 0.0
    %1074 = vmatpush2.msra.mxu0 0.0
    %1075 = vmatprep.subr.mxu0 0.0
    %1076 = vmatpush2.msra.mxu0 0.0
    %1077 = vmatprep.subr.mxu0 0.0
    %1078 = vmatpush2.msra.mxu0 0.0
    %1079 = vmatprep.subr.mxu0 0.0
    %1080 = vmatpush2.msra.mxu0 0.0
    %1081 = vmatprep.subr.mxu0 0.0
    %1082 = vmatpush2.msra.mxu0 0.0
    %1083 = vmatprep.subr.mxu0 0.0
    %1084 = vmatpush2.msra.mxu0 0.0
    %1085 = vmatprep.subr.mxu0 0.0
    %1086 = vmatpush2.msra.mxu0 0.0
    %1087 = vmatprep.subr.mxu0 0.0
    %1088 = vmatpush2.msra.mxu0 0.0
    %1089 = vmatprep.subr.mxu0 0.0
    %1090 = vmatpush2.msra.mxu0 0.0
    %1091 = vmatprep.subr.mxu0 0.0
    %1092 = vmatpush2.msra.mxu0 0.0
    %1093 = vmatprep.mubr.f32.mxu0 0.0
    %1094 = vmatmul.mubr.f32.gmra.mxu0 %v1024
    %v1095 = vpop.f32.mrf.mxu0
    %v1096 = vadd.f32 0.0, %v1095
    %v1097 = vpop.f32.mrf.mxu0
    %1098 = vmatprep.mubr.f32.mxu0 0.0
    %1099 = vmatmul.mubr.f32.gmra.mxu0 %v1027
    %v1100 = vpop.f32.mrf.mxu0
    %v1101 = vadd.f32 0.0, %v1100
    %v1102 = vpop.f32.mrf.mxu0
    %1103 = vdwg.mxu0
    %v1104 = vmax.f32 %v1096, 0.0
    %v1105 = vmax.f32 %v1101, 0.0
    %1106 = vmatprep.subr.mxu0 0.0
    %1107 = vmatpush1.msra.mxu0 0.0
    %1108 = vmatprep.subr.mxu0 0.0
    %1109 = vmatpush1.msra.mxu0 0.0
    %1110 = vmatprep.subr.mxu0 0.0
    %1111 = vmatpush1.msra.mxu0 0.0
    %1112 = vmatprep.subr.mxu0 0.0
    %1113 = vmatpush1.msra.mxu0 0.0
    %1114 = vmatprep.subr.mxu0 0.0
    %1115 = vmatpush1.msra.mxu0 0.0
    %1116 = vmatprep.subr.mxu0 0.0
    %1117 = vmatpush1.msra.mxu0 0.0
    %1118 = vmatprep.subr.mxu0 0.0
    %1119 = vmatpush1.msra.mxu0 0.0
    %1120 = vmatprep.subr.mxu0 0.0
    %1121 = vmatpush1.msra.mxu0 0.0
    %1122 = vmatprep.subr.mxu0 0.0
    %1123 = vmatpush1.msra.mxu0 0.0
    %1124 = vmatprep.subr.mxu0 0.0
    %1125 = vmatpush1.msra.mxu0 0.0
    %1126 = vmatprep.subr.mxu0 0.0
    %1127 = vmatpush1.msra.mxu0 0.0
    %1128 = vmatprep.subr.mxu0 0.0
    %1129 = vmatpush1.msra.mxu0 0.0
    %1130 = vmatprep.subr.mxu0 0.0
    %1131 = vmatpush1.msra.mxu0 0.0
    %1132 = vmatprep.subr.mxu0 0.0
    %1133 = vmatpush1.msra.mxu0 0.0
    %1134 = vmatprep.subr.mxu0 0.0
    %1135 = vmatpush1.msra.mxu0 %v1105
    %1136 = vmatprep.subr.mxu0 0.0
    %1137 = vmatpush1.msra.mxu0 %v1104
    %1138 = vmatprep.subr.mxu0 0.0
    %1139 = vmatpush2.msra.mxu0 0.0
    %1140 = vmatprep.subr.mxu0 0.0
    %1141 = vmatpush2.msra.mxu0 0.0
    %1142 = vmatprep.subr.mxu0 0.0
    %1143 = vmatpush2.msra.mxu0 0.0
    %1144 = vmatprep.subr.mxu0 0.0
    %1145 = vmatpush2.msra.mxu0 0.0
    %1146 = vmatprep.subr.mxu0 0.0
    %1147 = vmatpush2.msra.mxu0 0.0
    %1148 = vmatprep.subr.mxu0 0.0
    %1149 = vmatpush2.msra.mxu0 0.0
    %1150 = vmatprep.subr.mxu0 0.0
    %1151 = vmatpush2.msra.mxu0 0.0
    %1152 = vmatprep.subr.mxu0 0.0
    %1153 = vmatpush2.msra.mxu0 0.0
    %1154 = vmatprep.subr.mxu0 0.0
    %1155 = vmatpush2.msra.mxu0 0.0
    %1156 = vmatprep.subr.mxu0 0.0
    %1157 = vmatpush2.msra.mxu0 0.0
    %1158 = vmatprep.subr.mxu0 0.0
    %1159 = vmatpush2.msra.mxu0 0.0
    %1160 = vmatprep.subr.mxu0 0.0
    %1161 = vmatpush2.msra.mxu0 0.0
    %1162 = vmatprep.subr.mxu0 0.0
    %1163 = vmatpush2.msra.mxu0 0.0
    %1164 = vmatprep.subr.mxu0 0.0
    %1165 = vmatpush2.msra.mxu0 0.0
    %1166 = vmatprep.subr.mxu0 0.0
    %1167 = vmatpush2.msra.mxu0 0.0
    %1168 = vmatprep.subr.mxu0 0.0
    %1169 = vmatpush2.msra.mxu0 0.0
    %1170 = vmatprep.mubr.f32.mxu0 0.0
    %1171 = vmatmul.mubr.f32.gmra.mxu0 %v785
    %v1172 = vpop.f32.mrf.mxu0
    %v1173 = vadd.f32 0.0, %v1172
    %v1174 = vpop.f32.mrf.mxu0
    %1175 = vmatprep.mubr.f32.mxu0 0.0
    %1176 = vmatmul.mubr.f32.gmra.mxu0 %v788
    %v1177 = vpop.f32.mrf.mxu0
    %v1178 = vadd.f32 0.0, %v1177
    %v1179 = vpop.f32.mrf.mxu0
    %1180 = vdwg.mxu0
    %v1182 = vsel %vm354, %v1173, 0
    %v1185 = vsel %vm354, %v1178, 0
    %1187 = vmatprep.subr.mxu0 0.0
    %1188 = vmatpush1.msra.mxu0 0.0
    %1189 = vmatprep.subr.mxu0 0.0
    %1190 = vmatpush1.msra.mxu0 0.0
    %1191 = vmatprep.subr.mxu0 0.0
    %1192 = vmatpush1.msra.mxu0 0.0
    %1193 = vmatprep.subr.mxu0 0.0
    %1194 = vmatpush1.msra.mxu0 0.0
    %1195 = vmatprep.subr.mxu0 0.0
    %1196 = vmatpush1.msra.mxu0 0.0
    %1197 = vmatprep.subr.mxu0 0.0
    %1198 = vmatpush1.msra.mxu0 0.0
    %1199 = vmatprep.subr.mxu0 0.0
    %1200 = vmatpush1.msra.mxu0 0.0
    %1201 = vmatprep.subr.mxu0 0.0
    %1202 = vmatpush1.msra.mxu0 0.0
    %1203 = vmatprep.subr.mxu0 0.0
    %1204 = vmatpush1.msra.mxu0 0.0
    %1205 = vmatprep.subr.mxu0 0.0
    %1206 = vmatpush1.msra.mxu0 0.0
    %1207 = vmatprep.subr.mxu0 0.0
    %1208 = vmatpush1.msra.mxu0 0.0
    %1209 = vmatprep.subr.mxu0 0.0
    %1210 = vmatpush1.msra.mxu0 0.0
    %1211 = vmatprep.subr.mxu0 0.0
    %1212 = vmatpush1.msra.mxu0 %v783
    %1213 = vmatprep.subr.mxu0 0.0
    %1214 = vmatpush1.msra.mxu0 %v782
    %1215 = vmatprep.subr.mxu0 0.0
    %1216 = vmatpush1.msra.mxu0 %v781
    %1217 = vmatprep.subr.mxu0 0.0
    %1218 = vmatpush1.msra.mxu0 %v780
    %1219 = vmatprep.subr.mxu0 0.0
    %1220 = vmatpush2.msra.mxu0 0.0
    %1221 = vmatprep.subr.mxu0 0.0
    %1222 = vmatpush2.msra.mxu0 0.0
    %1223 = vmatprep.subr.mxu0 0.0
    %1224 = vmatpush2.msra.mxu0 0.0
    %1225 = vmatprep.subr.mxu0 0.0
    %1226 = vmatpush2.msra.mxu0 0.0
    %1227 = vmatprep.subr.mxu0 0.0
    %1228 = vmatpush2.msra.mxu0 0.0
    %1229 = vmatprep.subr.mxu0 0.0
    %1230 = vmatpush2.msra.mxu0 0.0
    %1231 = vmatprep.subr.mxu0 0.0
    %1232 = vmatpush2.msra.mxu0 0.0
    %1233 = vmatprep.subr.mxu0 0.0
    %1234 = vmatpush2.msra.mxu0 0.0
    %1235 = vmatprep.subr.mxu0 0.0
    %1236 = vmatpush2.msra.mxu0 0.0
    %1237 = vmatprep.subr.mxu0 0.0
    %1238 = vmatpush2.msra.mxu0 0.0
    %1239 = vmatprep.subr.mxu0 0.0
    %1240 = vmatpush2.msra.mxu0 0.0
    %1241 = vmatprep.subr.mxu0 0.0
    %1242 = vmatpush2.msra.mxu0 0.0
    %1243 = vmatprep.subr.mxu0 0.0
    %1244 = vmatpush2.msra.mxu0 0.0
    %1245 = vmatprep.subr.mxu0 0.0
    %1246 = vmatpush2.msra.mxu0 0.0
    %1247 = vmatprep.subr.mxu0 0.0
    %1248 = vmatpush2.msra.mxu0 0.0
    %1249 = vmatprep.subr.mxu0 0.0
    %1250 = vmatpush2.msra.mxu0 0.0
    %1251 = vmatprep.mubr.f32.mxu0 0.0
    %1252 = vmatmul.mubr.f32.gmra.mxu0 %v1182
    %v1253 = vpop.f32.mrf.mxu0
    %v1254 = vadd.f32 0.0, %v1253
    %v1255 = vpop.f32.mrf.mxu0
    %1256 = vmatprep.mubr.f32.mxu0 0.0
    %1257 = vmatmul.mubr.f32.gmra.mxu0 %v1185
    %v1258 = vpop.f32.mrf.mxu0
    %v1259 = vadd.f32 0.0, %v1258
    %v1260 = vpop.f32.mrf.mxu0
    %1261 = vdwg.mxu0
    %v1262 = vmax.f32 %v1254, 0.0
    %v1263 = vmax.f32 %v1259, 0.0
    %v1264 = vmul.f32 %v1262, %v758
    %v1265 = vmul.f32 %v1263, %v758
    %v1266 = vsel %vm354, %v1264, 0.0
    %1267 = vadd.xlane.f32.xlu0 %v1266
    %v1268 = vpop.xlane.xlu0 %1267
    %v1269 = vsel %vm354, %v1265, 0.0
    %1270 = vadd.xlane.f32.xlu0 %v1269
    %v1271 = vpop.xlane.xlu0 %1270
    %v1272 = vadd.f32 %v1268, %v772
    %v1273 = vadd.f32 %v1271, %v772
    %s1274 = scalar_lea.vmem [#allocation3], 32
    %v1275 = vld [vmem:[%s1274] sm:$0xff]
    %v1276 = vld [vmem:[%s1274 + $0x8] sm:$0xff]
    %s1277 = scalar_lea.vmem %s6, 64
    %v1278 = vld [vmem:[%s1277] sm:$0xff]
    %v1279 = vld [vmem:[%s1277 + $0x8] sm:$0xff]
    %v1280 = vld [vmem:[%s1277 + $0x10] sm:$0xff]
    %v1281 = vld [vmem:[%s1277 + $0x18] sm:$0xff]
    %v1283 = vsel %vm85, %v1275, 0
    %v1286 = vsel %vm85, %v1276, 0
    %1288 = vmatprep.subr.mxu0 0.0
    %1289 = vmatpush1.msra.mxu0 0.0
    %1290 = vmatprep.subr.mxu0 0.0
    %1291 = vmatpush1.msra.mxu0 0.0
    %1292 = vmatprep.subr.mxu0 0.0
    %1293 = vmatpush1.msra.mxu0 0.0
    %1294 = vmatprep.subr.mxu0 0.0
    %1295 = vmatpush1.msra.mxu0 0.0
    %1296 = vmatprep.subr.mxu0 0.0
    %1297 = vmatpush1.msra.mxu0 0.0
    %1298 = vmatprep.subr.mxu0 0.0
    %1299 = vmatpush1.msra.mxu0 0.0
    %1300 = vmatprep.subr.mxu0 0.0
    %1301 = vmatpush1.msra.mxu0 0.0
    %1302 = vmatprep.subr.mxu0 0.0
    %1303 = vmatpush1.msra.mxu0 0.0
    %1304 = vmatprep.subr.mxu0 0.0
    %1305 = vmatpush1.msra.mxu0 0.0
    %1306 = vmatprep.subr.mxu0 0.0
    %1307 = vmatpush1.msra.mxu0 0.0
    %1308 = vmatprep.subr.mxu0 0.0
    %1309 = vmatpush1.msra.mxu0 0.0
    %1310 = vmatprep.subr.mxu0 0.0
    %1311 = vmatpush1.msra.mxu0 0.0
    %1312 = vmatprep.subr.mxu0 0.0
    %1313 = vmatpush1.msra.mxu0 0.0
    %1314 = vmatprep.subr.mxu0 0.0
    %1315 = vmatpush1.msra.mxu0 0.0
    %1316 = vmatprep.subr.mxu0 0.0
    %1317 = vmatpush1.msra.mxu0 %v264
    %1318 = vmatprep.subr.mxu0 0.0
    %1319 = vmatpush1.msra.mxu0 %v262
    %1320 = vmatprep.subr.mxu0 0.0
    %1321 = vmatpush2.msra.mxu0 0.0
    %1322 = vmatprep.subr.mxu0 0.0
    %1323 = vmatpush2.msra.mxu0 0.0
    %1324 = vmatprep.subr.mxu0 0.0
    %1325 = vmatpush2.msra.mxu0 0.0
    %1326 = vmatprep.subr.mxu0 0.0
    %1327 = vmatpush2.msra.mxu0 0.0
    %1328 = vmatprep.subr.mxu0 0.0
    %1329 = vmatpush2.msra.mxu0 0.0
    %1330 = vmatprep.subr.mxu0 0.0
    %1331 = vmatpush2.msra.mxu0 0.0
    %1332 = vmatprep.subr.mxu0 0.0
    %1333 = vmatpush2.msra.mxu0 0.0
    %1334 = vmatprep.subr.mxu0 0.0
    %1335 = vmatpush2.msra.mxu0 0.0
    %1336 = vmatprep.subr.mxu0 0.0
    %1337 = vmatpush2.msra.mxu0 0.0
    %1338 = vmatprep.subr.mxu0 0.0
    %1339 = vmatpush2.msra.mxu0 0.0
    %1340 = vmatprep.subr.mxu0 0.0
    %1341 = vmatpush2.msra.mxu0 0.0
    %1342 = vmatprep.subr.mxu0 0.0
    %1343 = vmatpush2.msra.mxu0 0.0
    %1344 = vmatprep.subr.mxu0 0.0
    %1345 = vmatpush2.msra.mxu0 0.0
    %1346 = vmatprep.subr.mxu0 0.0
    %1347 = vmatpush2.msra.mxu0 0.0
    %1348 = vmatprep.subr.mxu0 0.0
    %1349 = vmatpush2.msra.mxu0 0.0
    %1350 = vmatprep.subr.mxu0 0.0
    %1351 = vmatpush2.msra.mxu0 0.0
    %1352 = vmatprep.mubr.f32.mxu0 0.0
    %1353 = vmatmul.mubr.f32.gmra.mxu0 %v1283
    %v1354 = vpop.f32.mrf.mxu0
    %v1355 = vadd.f32 0.0, %v1354
    %v1356 = vpop.f32.mrf.mxu0
    %1357 = vmatprep.mubr.f32.mxu0 0.0
    %1358 = vmatmul.mubr.f32.gmra.mxu0 %v1286
    %v1359 = vpop.f32.mrf.mxu0
    %v1360 = vadd.f32 0.0, %v1359
    %v1361 = vpop.f32.mrf.mxu0
    %1362 = vdwg.mxu0
    %v1364 = vsel %vm354, %v1355, 0
    %v1367 = vsel %vm354, %v1360, 0
    %1369 = vmatprep.subr.mxu0 0.0
    %1370 = vmatpush1.msra.mxu0 0.0
    %1371 = vmatprep.subr.mxu0 0.0
    %1372 = vmatpush1.msra.mxu0 0.0
    %1373 = vmatprep.subr.mxu0 0.0
    %1374 = vmatpush1.msra.mxu0 0.0
    %1375 = vmatprep.subr.mxu0 0.0
    %1376 = vmatpush1.msra.mxu0 0.0
    %1377 = vmatprep.subr.mxu0 0.0
    %1378 = vmatpush1.msra.mxu0 0.0
    %1379 = vmatprep.subr.mxu0 0.0
    %1380 = vmatpush1.msra.mxu0 0.0
    %1381 = vmatprep.subr.mxu0 0.0
    %1382 = vmatpush1.msra.mxu0 0.0
    %1383 = vmatprep.subr.mxu0 0.0
    %1384 = vmatpush1.msra.mxu0 0.0
    %1385 = vmatprep.subr.mxu0 0.0
    %1386 = vmatpush1.msra.mxu0 0.0
    %1387 = vmatprep.subr.mxu0 0.0
    %1388 = vmatpush1.msra.mxu0 0.0
    %1389 = vmatprep.subr.mxu0 0.0
    %1390 = vmatpush1.msra.mxu0 0.0
    %1391 = vmatprep.subr.mxu0 0.0
    %1392 = vmatpush1.msra.mxu0 0.0
    %1393 = vmatprep.subr.mxu0 0.0
    %1394 = vmatpush1.msra.mxu0 %v1281
    %1395 = vmatprep.subr.mxu0 0.0
    %1396 = vmatpush1.msra.mxu0 %v1280
    %1397 = vmatprep.subr.mxu0 0.0
    %1398 = vmatpush1.msra.mxu0 %v1279
    %1399 = vmatprep.subr.mxu0 0.0
    %1400 = vmatpush1.msra.mxu0 %v1278
    %1401 = vmatprep.subr.mxu0 0.0
    %1402 = vmatpush2.msra.mxu0 0.0
    %1403 = vmatprep.subr.mxu0 0.0
    %1404 = vmatpush2.msra.mxu0 0.0
    %1405 = vmatprep.subr.mxu0 0.0
    %1406 = vmatpush2.msra.mxu0 0.0
    %1407 = vmatprep.subr.mxu0 0.0
    %1408 = vmatpush2.msra.mxu0 0.0
    %1409 = vmatprep.subr.mxu0 0.0
    %1410 = vmatpush2.msra.mxu0 0.0
    %1411 = vmatprep.subr.mxu0 0.0
    %1412 = vmatpush2.msra.mxu0 0.0
    %1413 = vmatprep.subr.mxu0 0.0
    %1414 = vmatpush2.msra.mxu0 0.0
    %1415 = vmatprep.subr.mxu0 0.0
    %1416 = vmatpush2.msra.mxu0 0.0
    %1417 = vmatprep.subr.mxu0 0.0
    %1418 = vmatpush2.msra.mxu0 0.0
    %1419 = vmatprep.subr.mxu0 0.0
    %1420 = vmatpush2.msra.mxu0 0.0
    %1421 = vmatprep.subr.mxu0 0.0
    %1422 = vmatpush2.msra.mxu0 0.0
    %1423 = vmatprep.subr.mxu0 0.0
    %1424 = vmatpush2.msra.mxu0 0.0
    %1425 = vmatprep.subr.mxu0 0.0
    %1426 = vmatpush2.msra.mxu0 0.0
    %1427 = vmatprep.subr.mxu0 0.0
    %1428 = vmatpush2.msra.mxu0 0.0
    %1429 = vmatprep.subr.mxu0 0.0
    %1430 = vmatpush2.msra.mxu0 0.0
    %1431 = vmatprep.subr.mxu0 0.0
    %1432 = vmatpush2.msra.mxu0 0.0
    %1433 = vmatprep.mubr.f32.mxu0 0.0
    %1434 = vmatmul.mubr.f32.gmra.mxu0 %v1364
    %v1435 = vpop.f32.mrf.mxu0
    %v1436 = vadd.f32 0.0, %v1435
    %v1437 = vpop.f32.mrf.mxu0
    %1438 = vmatprep.mubr.f32.mxu0 0.0
    %1439 = vmatmul.mubr.f32.gmra.mxu0 %v1367
    %v1440 = vpop.f32.mrf.mxu0
    %v1441 = vadd.f32 0.0, %v1440
    %v1442 = vpop.f32.mrf.mxu0
    %1443 = vdwg.mxu0
    %v1444 = vmax.f32 %v1436, 0.0
    %v1445 = vmax.f32 %v1441, 0.0
    %1446 = vmatprep.subr.mxu0 0.0
    %1447 = vmatpush1.msra.mxu0 0.0
    %1448 = vmatprep.subr.mxu0 0.0
    %1449 = vmatpush1.msra.mxu0 0.0
    %1450 = vmatprep.subr.mxu0 0.0
    %1451 = vmatpush1.msra.mxu0 0.0
    %1452 = vmatprep.subr.mxu0 0.0
    %1453 = vmatpush1.msra.mxu0 0.0
    %1454 = vmatprep.subr.mxu0 0.0
    %1455 = vmatpush1.msra.mxu0 0.0
    %1456 = vmatprep.subr.mxu0 0.0
    %1457 = vmatpush1.msra.mxu0 0.0
    %1458 = vmatprep.subr.mxu0 0.0
    %1459 = vmatpush1.msra.mxu0 0.0
    %1460 = vmatprep.subr.mxu0 0.0
    %1461 = vmatpush1.msra.mxu0 0.0
    %1462 = vmatprep.subr.mxu0 0.0
    %1463 = vmatpush1.msra.mxu0 0.0
    %1464 = vmatprep.subr.mxu0 0.0
    %1465 = vmatpush1.msra.mxu0 0.0
    %1466 = vmatprep.subr.mxu0 0.0
    %1467 = vmatpush1.msra.mxu0 0.0
    %1468 = vmatprep.subr.mxu0 0.0
    %1469 = vmatpush1.msra.mxu0 0.0
    %1470 = vmatprep.subr.mxu0 0.0
    %1471 = vmatpush1.msra.mxu0 0.0
    %1472 = vmatprep.subr.mxu0 0.0
    %1473 = vmatpush1.msra.mxu0 0.0
    %1474 = vmatprep.subr.mxu0 0.0
    %1475 = vmatpush1.msra.mxu0 %v1445
    %1476 = vmatprep.subr.mxu0 0.0
    %1477 = vmatpush1.msra.mxu0 %v1444
    %1478 = vmatprep.subr.mxu0 0.0
    %1479 = vmatpush2.msra.mxu0 0.0
    %1480 = vmatprep.subr.mxu0 0.0
    %1481 = vmatpush2.msra.mxu0 0.0
    %1482 = vmatprep.subr.mxu0 0.0
    %1483 = vmatpush2.msra.mxu0 0.0
    %1484 = vmatprep.subr.mxu0 0.0
    %1485 = vmatpush2.msra.mxu0 0.0
    %1486 = vmatprep.subr.mxu0 0.0
    %1487 = vmatpush2.msra.mxu0 0.0
    %1488 = vmatprep.subr.mxu0 0.0
    %1489 = vmatpush2.msra.mxu0 0.0
    %1490 = vmatprep.subr.mxu0 0.0
    %1491 = vmatpush2.msra.mxu0 0.0
    %1492 = vmatprep.subr.mxu0 0.0
    %1493 = vmatpush2.msra.mxu0 0.0
    %1494 = vmatprep.subr.mxu0 0.0
    %1495 = vmatpush2.msra.mxu0 0.0
    %1496 = vmatprep.subr.mxu0 0.0
    %1497 = vmatpush2.msra.mxu0 0.0
    %1498 = vmatprep.subr.mxu0 0.0
    %1499 = vmatpush2.msra.mxu0 0.0
    %1500 = vmatprep.subr.mxu0 0.0
    %1501 = vmatpush2.msra.mxu0 0.0
    %1502 = vmatprep.subr.mxu0 0.0
    %1503 = vmatpush2.msra.mxu0 0.0
    %1504 = vmatprep.subr.mxu0 0.0
    %1505 = vmatpush2.msra.mxu0 0.0
    %1506 = vmatprep.subr.mxu0 0.0
    %1507 = vmatpush2.msra.mxu0 0.0
    %1508 = vmatprep.subr.mxu0 0.0
    %1509 = vmatpush2.msra.mxu0 0.0
    %1510 = vmatprep.mubr.f32.mxu0 0.0
    %1511 = vmatmul.mubr.f32.gmra.mxu0 %v1283
    %v1512 = vpop.f32.mrf.mxu0
    %v1513 = vadd.f32 0.0, %v1512
    %v1514 = vpop.f32.mrf.mxu0
    %1515 = vmatprep.mubr.f32.mxu0 0.0
    %1516 = vmatmul.mubr.f32.gmra.mxu0 %v1286
    %v1517 = vpop.f32.mrf.mxu0
    %v1518 = vadd.f32 0.0, %v1517
    %v1519 = vpop.f32.mrf.mxu0
    %1520 = vdwg.mxu0
    %v1522 = vsel %vm354, %v1513, 0
    %v1525 = vsel %vm354, %v1518, 0
    %1527 = vmatprep.subr.mxu0 0.0
    %1528 = vmatpush1.msra.mxu0 0.0
    %1529 = vmatprep.subr.mxu0 0.0
    %1530 = vmatpush1.msra.mxu0 0.0
    %1531 = vmatprep.subr.mxu0 0.0
    %1532 = vmatpush1.msra.mxu0 0.0
    %1533 = vmatprep.subr.mxu0 0.0
    %1534 = vmatpush1.msra.mxu0 0.0
    %1535 = vmatprep.subr.mxu0 0.0
    %1536 = vmatpush1.msra.mxu0 0.0
    %1537 = vmatprep.subr.mxu0 0.0
    %1538 = vmatpush1.msra.mxu0 0.0
    %1539 = vmatprep.subr.mxu0 0.0
    %1540 = vmatpush1.msra.mxu0 0.0
    %1541 = vmatprep.subr.mxu0 0.0
    %1542 = vmatpush1.msra.mxu0 0.0
    %1543 = vmatprep.subr.mxu0 0.0
    %1544 = vmatpush1.msra.mxu0 0.0
    %1545 = vmatprep.subr.mxu0 0.0
    %1546 = vmatpush1.msra.mxu0 0.0
    %1547 = vmatprep.subr.mxu0 0.0
    %1548 = vmatpush1.msra.mxu0 0.0
    %1549 = vmatprep.subr.mxu0 0.0
    %1550 = vmatpush1.msra.mxu0 0.0
    %1551 = vmatprep.subr.mxu0 0.0
    %1552 = vmatpush1.msra.mxu0 %v1281
    %1553 = vmatprep.subr.mxu0 0.0
    %1554 = vmatpush1.msra.mxu0 %v1280
    %1555 = vmatprep.subr.mxu0 0.0
    %1556 = vmatpush1.msra.mxu0 %v1279
    %1557 = vmatprep.subr.mxu0 0.0
    %1558 = vmatpush1.msra.mxu0 %v1278
    %1559 = vmatprep.subr.mxu0 0.0
    %1560 = vmatpush2.msra.mxu0 0.0
    %1561 = vmatprep.subr.mxu0 0.0
    %1562 = vmatpush2.msra.mxu0 0.0
    %1563 = vmatprep.subr.mxu0 0.0
    %1564 = vmatpush2.msra.mxu0 0.0
    %1565 = vmatprep.subr.mxu0 0.0
    %1566 = vmatpush2.msra.mxu0 0.0
    %1567 = vmatprep.subr.mxu0 0.0
    %1568 = vmatpush2.msra.mxu0 0.0
    %1569 = vmatprep.subr.mxu0 0.0
    %1570 = vmatpush2.msra.mxu0 0.0
    %1571 = vmatprep.subr.mxu0 0.0
    %1572 = vmatpush2.msra.mxu0 0.0
    %1573 = vmatprep.subr.mxu0 0.0
    %1574 = vmatpush2.msra.mxu0 0.0
    %1575 = vmatprep.subr.mxu0 0.0
    %1576 = vmatpush2.msra.mxu0 0.0
    %1577 = vmatprep.subr.mxu0 0.0
    %1578 = vmatpush2.msra.mxu0 0.0
    %1579 = vmatprep.subr.mxu0 0.0
    %1580 = vmatpush2.msra.mxu0 0.0
    %1581 = vmatprep.subr.mxu0 0.0
    %1582 = vmatpush2.msra.mxu0 0.0
    %1583 = vmatprep.subr.mxu0 0.0
    %1584 = vmatpush2.msra.mxu0 0.0
    %1585 = vmatprep.subr.mxu0 0.0
    %1586 = vmatpush2.msra.mxu0 0.0
    %1587 = vmatprep.subr.mxu0 0.0
    %1588 = vmatpush2.msra.mxu0 0.0
    %1589 = vmatprep.subr.mxu0 0.0
    %1590 = vmatpush2.msra.mxu0 0.0
    %1591 = vmatprep.mubr.f32.mxu0 0.0
    %1592 = vmatmul.mubr.f32.gmra.mxu0 %v1522
    %v1593 = vpop.f32.mrf.mxu0
    %v1594 = vadd.f32 0.0, %v1593
    %v1595 = vpop.f32.mrf.mxu0
    %1596 = vmatprep.mubr.f32.mxu0 0.0
    %1597 = vmatmul.mubr.f32.gmra.mxu0 %v1525
    %v1598 = vpop.f32.mrf.mxu0
    %v1599 = vadd.f32 0.0, %v1598
    %v1600 = vpop.f32.mrf.mxu0
    %1601 = vdwg.mxu0
    %v1602 = vmax.f32 %v1594, 0.0
    %v1603 = vmax.f32 %v1599, 0.0
    %1604 = vmatprep.subr.mxu0 0.0
    %1605 = vmatpush1.msra.mxu0 0.0
    %1606 = vmatprep.subr.mxu0 0.0
    %1607 = vmatpush1.msra.mxu0 0.0
    %1608 = vmatprep.subr.mxu0 0.0
    %1609 = vmatpush1.msra.mxu0 0.0
    %1610 = vmatprep.subr.mxu0 0.0
    %1611 = vmatpush1.msra.mxu0 0.0
    %1612 = vmatprep.subr.mxu0 0.0
    %1613 = vmatpush1.msra.mxu0 0.0
    %1614 = vmatprep.subr.mxu0 0.0
    %1615 = vmatpush1.msra.mxu0 0.0
    %1616 = vmatprep.subr.mxu0 0.0
    %1617 = vmatpush1.msra.mxu0 0.0
    %1618 = vmatprep.subr.mxu0 0.0
    %1619 = vmatpush1.msra.mxu0 0.0
    %1620 = vmatprep.subr.mxu0 0.0
    %1621 = vmatpush1.msra.mxu0 0.0
    %1622 = vmatprep.subr.mxu0 0.0
    %1623 = vmatpush1.msra.mxu0 0.0
    %1624 = vmatprep.subr.mxu0 0.0
    %1625 = vmatpush1.msra.mxu0 0.0
    %1626 = vmatprep.subr.mxu0 0.0
    %1627 = vmatpush1.msra.mxu0 0.0
    %1628 = vmatprep.subr.mxu0 0.0
    %1629 = vmatpush1.msra.mxu0 0.0
    %1630 = vmatprep.subr.mxu0 0.0
    %1631 = vmatpush1.msra.mxu0 0.0
    %1632 = vmatprep.subr.mxu0 0.0
    %1633 = vmatpush1.msra.mxu0 %v1603
    %1634 = vmatprep.subr.mxu0 0.0
    %1635 = vmatpush1.msra.mxu0 %v1602
    %1636 = vmatprep.subr.mxu0 0.0
    %1637 = vmatpush2.msra.mxu0 0.0
    %1638 = vmatprep.subr.mxu0 0.0
    %1639 = vmatpush2.msra.mxu0 0.0
    %1640 = vmatprep.subr.mxu0 0.0
    %1641 = vmatpush2.msra.mxu0 0.0
    %1642 = vmatprep.subr.mxu0 0.0
    %1643 = vmatpush2.msra.mxu0 0.0
    %1644 = vmatprep.subr.mxu0 0.0
    %1645 = vmatpush2.msra.mxu0 0.0
    %1646 = vmatprep.subr.mxu0 0.0
    %1647 = vmatpush2.msra.mxu0 0.0
    %1648 = vmatprep.subr.mxu0 0.0
    %1649 = vmatpush2.msra.mxu0 0.0
    %1650 = vmatprep.subr.mxu0 0.0
    %1651 = vmatpush2.msra.mxu0 0.0
    %1652 = vmatprep.subr.mxu0 0.0
    %1653 = vmatpush2.msra.mxu0 0.0
    %1654 = vmatprep.subr.mxu0 0.0
    %1655 = vmatpush2.msra.mxu0 0.0
    %1656 = vmatprep.subr.mxu0 0.0
    %1657 = vmatpush2.msra.mxu0 0.0
    %1658 = vmatprep.subr.mxu0 0.0
    %1659 = vmatpush2.msra.mxu0 0.0
    %1660 = vmatprep.subr.mxu0 0.0
    %1661 = vmatpush2.msra.mxu0 0.0
    %1662 = vmatprep.subr.mxu0 0.0
    %1663 = vmatpush2.msra.mxu0 0.0
    %1664 = vmatprep.subr.mxu0 0.0
    %1665 = vmatpush2.msra.mxu0 0.0
    %1666 = vmatprep.subr.mxu0 0.0
    %1667 = vmatpush2.msra.mxu0 0.0
    %1668 = vmatprep.mubr.f32.mxu0 0.0
    %1669 = vmatmul.mubr.f32.gmra.mxu0 %v1283
    %v1670 = vpop.f32.mrf.mxu0
    %v1671 = vadd.f32 0.0, %v1670
    %v1672 = vpop.f32.mrf.mxu0
    %1673 = vmatprep.mubr.f32.mxu0 0.0
    %1674 = vmatmul.mubr.f32.gmra.mxu0 %v1286
    %v1675 = vpop.f32.mrf.mxu0
    %v1676 = vadd.f32 0.0, %v1675
    %v1677 = vpop.f32.mrf.mxu0
    %1678 = vdwg.mxu0
    %v1680 = vsel %vm354, %v1671, 0
    %v1683 = vsel %vm354, %v1676, 0
    %1685 = vmatprep.subr.mxu0 0.0
    %1686 = vmatpush1.msra.mxu0 0.0
    %1687 = vmatprep.subr.mxu0 0.0
    %1688 = vmatpush1.msra.mxu0 0.0
    %1689 = vmatprep.subr.mxu0 0.0
    %1690 = vmatpush1.msra.mxu0 0.0
    %1691 = vmatprep.subr.mxu0 0.0
    %1692 = vmatpush1.msra.mxu0 0.0
    %1693 = vmatprep.subr.mxu0 0.0
    %1694 = vmatpush1.msra.mxu0 0.0
    %1695 = vmatprep.subr.mxu0 0.0
    %1696 = vmatpush1.msra.mxu0 0.0
    %1697 = vmatprep.subr.mxu0 0.0
    %1698 = vmatpush1.msra.mxu0 0.0
    %1699 = vmatprep.subr.mxu0 0.0
    %1700 = vmatpush1.msra.mxu0 0.0
    %1701 = vmatprep.subr.mxu0 0.0
    %1702 = vmatpush1.msra.mxu0 0.0
    %1703 = vmatprep.subr.mxu0 0.0
    %1704 = vmatpush1.msra.mxu0 0.0
    %1705 = vmatprep.subr.mxu0 0.0
    %1706 = vmatpush1.msra.mxu0 0.0
    %1707 = vmatprep.subr.mxu0 0.0
    %1708 = vmatpush1.msra.mxu0 0.0
    %1709 = vmatprep.subr.mxu0 0.0
    %1710 = vmatpush1.msra.mxu0 %v1281
    %1711 = vmatprep.subr.mxu0 0.0
    %1712 = vmatpush1.msra.mxu0 %v1280
    %1713 = vmatprep.subr.mxu0 0.0
    %1714 = vmatpush1.msra.mxu0 %v1279
    %1715 = vmatprep.subr.mxu0 0.0
    %1716 = vmatpush1.msra.mxu0 %v1278
    %1717 = vmatprep.subr.mxu0 0.0
    %1718 = vmatpush2.msra.mxu0 0.0
    %1719 = vmatprep.subr.mxu0 0.0
    %1720 = vmatpush2.msra.mxu0 0.0
    %1721 = vmatprep.subr.mxu0 0.0
    %1722 = vmatpush2.msra.mxu0 0.0
    %1723 = vmatprep.subr.mxu0 0.0
    %1724 = vmatpush2.msra.mxu0 0.0
    %1725 = vmatprep.subr.mxu0 0.0
    %1726 = vmatpush2.msra.mxu0 0.0
    %1727 = vmatprep.subr.mxu0 0.0
    %1728 = vmatpush2.msra.mxu0 0.0
    %1729 = vmatprep.subr.mxu0 0.0
    %1730 = vmatpush2.msra.mxu0 0.0
    %1731 = vmatprep.subr.mxu0 0.0
    %1732 = vmatpush2.msra.mxu0 0.0
    %1733 = vmatprep.subr.mxu0 0.0
    %1734 = vmatpush2.msra.mxu0 0.0
    %1735 = vmatprep.subr.mxu0 0.0
    %1736 = vmatpush2.msra.mxu0 0.0
    %1737 = vmatprep.subr.mxu0 0.0
    %1738 = vmatpush2.msra.mxu0 0.0
    %1739 = vmatprep.subr.mxu0 0.0
    %1740 = vmatpush2.msra.mxu0 0.0
    %1741 = vmatprep.subr.mxu0 0.0
    %1742 = vmatpush2.msra.mxu0 0.0
    %1743 = vmatprep.subr.mxu0 0.0
    %1744 = vmatpush2.msra.mxu0 0.0
    %1745 = vmatprep.subr.mxu0 0.0
    %1746 = vmatpush2.msra.mxu0 0.0
    %1747 = vmatprep.subr.mxu0 0.0
    %1748 = vmatpush2.msra.mxu0 0.0
    %1749 = vmatprep.mubr.f32.mxu0 0.0
    %1750 = vmatmul.mubr.f32.gmra.mxu0 %v1680
    %v1751 = vpop.f32.mrf.mxu0
    %v1752 = vadd.f32 0.0, %v1751
    %v1753 = vpop.f32.mrf.mxu0
    %1754 = vmatprep.mubr.f32.mxu0 0.0
    %1755 = vmatmul.mubr.f32.gmra.mxu0 %v1683
    %v1756 = vpop.f32.mrf.mxu0
    %v1757 = vadd.f32 0.0, %v1756
    %v1758 = vpop.f32.mrf.mxu0
    %1759 = vdwg.mxu0
    %v1760 = vmax.f32 %v1752, 0.0
    %v1761 = vmax.f32 %v1757, 0.0
    %v1762 = vmul.f32 %v1760, %v758
    %v1763 = vmul.f32 %v1761, %v758
    %v1764 = vsel %vm354, %v1762, 0.0
    %1765 = vadd.xlane.f32.xlu0 %v1764
    %v1766 = vpop.xlane.xlu0 %1765
    %v1767 = vsel %vm354, %v1763, 0.0
    %1768 = vadd.xlane.f32.xlu0 %v1767
    %v1769 = vpop.xlane.xlu0 %1768
    %v1770 = vadd.f32 %v1766, %v772
    %v1771 = vadd.f32 %v1769, %v772
    %v1772 = vmax.f32 %v774, %v1272
    %v1773 = vmax.f32 %v775, %v1273
    %v1774 = vmax.f32 %v1772, %v1770
    %v1775 = vmax.f32 %v1773, %v1771
    %v1776 = vsub.f32 %v774, %v1774
    %v1777 = vsub.f32 %v775, %v1775
    %v1778 = vmul.f32 %v1776, 1.442695
    %v1779 = vpow.pop %v1778
    %v1780 = vmul.f32 %v1777, 1.442695
    %v1781 = vpow.pop %v1780
    %v1782 = vsub.f32 %v1272, %v1774
    %v1783 = vsub.f32 %v1273, %v1775
    %v1784 = vmul.f32 %v1782, 1.442695
    %v1785 = vpow.pop %v1784
    %v1786 = vmul.f32 %v1783, 1.442695
    %v1787 = vpow.pop %v1786
    %v1788 = vsub.f32 %v1770, %v1774
    %v1789 = vsub.f32 %v1771, %v1775
    %v1790 = vmul.f32 %v1788, 1.442695
    %v1791 = vpow.pop %v1790
    %v1792 = vmul.f32 %v1789, 1.442695
    %v1793 = vpow.pop %v1792
    %v1794 = vadd.f32 %v1779, %v1785
    %v1795 = vadd.f32 %v1781, %v1787
    %v1796 = vadd.f32 %v1794, %v1791
    %v1797 = vadd.f32 %v1795, %v1793
    %v1798 = vrcp.pop %v1796
    %v1799 = vmul.f32 1.0, %v1798
    %v1800 = vrcp.pop %v1797
    %v1801 = vmul.f32 1.0, %v1800
    %v1802 = vmul.f32 %v1779, %v1799
    %v1803 = vmul.f32 %v1781, %v1801
    %1805 = vset.pattern.permute.xlu0 0
    %1806 = vperm.xlu0 %1805, %v1802
    %v1807 = vpop.permute.xlu0 %1806
    %1810 = vset.pattern.permute.xlu0 0
    %1811 = vperm.xlu0 %1810, %v1803
    %v1812 = vpop.permute.xlu0 %1811
    %v1814 = vmul.f32 %v1807, %v752
    %v1815 = vmul.f32 %v1812, %v753
    %v1816 = vmul.f32 %v1785, %v1799
    %v1817 = vmul.f32 %v1787, %v1801
    %1819 = vset.pattern.permute.xlu0 0
    %1820 = vperm.xlu0 %1819, %v1816
    %v1821 = vpop.permute.xlu0 %1820
    %1824 = vset.pattern.permute.xlu0 0
    %1825 = vperm.xlu0 %1824, %v1817
    %v1826 = vpop.permute.xlu0 %1825
    %v1828 = vmul.f32 %v1821, %v1262
    %v1829 = vmul.f32 %v1826, %v1263
    %v1830 = vadd.f32 %v1814, %v1828
    %v1831 = vadd.f32 %v1815, %v1829
    %v1832 = vmul.f32 %v1791, %v1799
    %v1833 = vmul.f32 %v1793, %v1801
    %1835 = vset.pattern.permute.xlu0 0
    %1836 = vperm.xlu0 %1835, %v1832
    %v1837 = vpop.permute.xlu0 %1836
    %1840 = vset.pattern.permute.xlu0 0
    %1841 = vperm.xlu0 %1840, %v1833
    %v1842 = vpop.permute.xlu0 %1841
    %v1844 = vmul.f32 %v1837, %v1760
    %v1845 = vmul.f32 %v1842, %v1761
    %v1846 = vadd.f32 %v1830, %v1844
    %v1847 = vadd.f32 %v1831, %v1845
    %1848 = vst.msk [vmem:[#allocation6] sm:$0xff] %vm354, %v1846
    %1849 = vst.msk [vmem:[#allocation6 + $0x8] sm:$0xff] %vm354, %v1847
    // Predicated region
    $region42: #{hgc_cpt_forward.1} parent=1 // pred_check
      _
    $region43: #{hgc_cpt_forward.1} parent=1 // pred_check_branch
      %1851 = sbr.rel (0) target = $region45
    $region44: #{hgc_cpt_forward.1} parent=1 // pred_region
      %s1853 = ssub.s32 256, 256
      %1854 = vsyncadd [#allocation5], %s1853
      %s1855 = sshll.u32 [#allocation6], 4
      %s1856 = int_to_ptr.vmem [resolvable:$true] %s1855
      %1861 = dma.vmem_to_hbm [thread:$0]  %s1856, 256, %s9, [#allocation5], 128, 128, 8
    $region45: #{hgc_cpt_forward.1} parent=1 // pred_fallthru
      _
    // Predicated region
    $region46: #{hgc_cpt_forward.1} parent=1 // pred_check
      _
    $region47: #{hgc_cpt_forward.1} parent=1 // pred_check_branch
      %1863 = sbr.rel (0) target = $region49
    $region48: #{hgc_cpt_forward.1} parent=1 // pred_region
      %1864 = dma.done [#allocation5], 256
    $region49: #{hgc_cpt_forward.1} parent=1 // pred_fallthru
      _
    %1865 = vsyncpa [#allocation4], 1
    %1866 = vsyncpa [#allocation5], 1

</llo_original>
